<compile_context>
chip_gen: v7x
topology: tpu7x:2x2x1
jax: 0.10.0
libtpu: 0.0.40
codegen_flags: <defaults>
</compile_context>

<pallas_src>
import math

import jax
import jax.numpy as jnp
from jax.experimental import pallas as pl
from jax.experimental.pallas import tpu as pltpu

LANE = 128          # lane padding target for all feature-like dims
_BN_EPS = 1e-5


# --------------------------------------------------------------------------
# Kernel
# --------------------------------------------------------------------------
def _gcn_forward_kernel(a_ref, x_ref, p_ref, w_ref, b_ref, out_ref):
    # a_ref : [Np, Np]   bf16  weighted adjacency (rows = target, cols = source)
    # x_ref : [Np, 128]  bf16  node features (lane-padded)
    # p_ref : [Bp, Np]   bf16  mean-pool matrix
    # w_ref : [1024,128] bf16  packed weights:
    #         rows   0:256  -> layer1 [W_rel'; W_root']   (BN folded)
    #         rows 256:512  -> layer2 [W_rel'; W_root']
    #         rows 512:768  -> layer3 [W_rel'; W_root']
    #         rows 768:896  -> lin1 weight (padded to 128x128)
    #         rows 896:1024 -> lin2 weight (padded to 128x128)
    # b_ref : [8, 128]   f32   packed biases: rows 0..2 conv layers (BN folded),
    #                          row 3 lin1, row 4 lin2, rows 5..7 zero padding.
    a = a_ref[...]

    def conv_bn_relu(h_bf, w_row0, b_row):
        # GraphConv + folded BN + ReLU, fused as one matmul over [agg | h].
        agg = jnp.dot(a, h_bf, preferred_element_type=jnp.float32)          # [Np,128] f32
        cat = jnp.concatenate([agg.astype(jnp.bfloat16), h_bf], axis=-1)    # [Np,256] bf16
        w = w_ref[w_row0:w_row0 + 2 * LANE, :]                              # [256,128] bf16
        out = jnp.dot(cat, w, preferred_element_type=jnp.float32)           # [Np,128] f32
        out = out + b_ref[b_row:b_row + 1, :]                               # f32 epilogue
        return jnp.maximum(out, 0.0).astype(jnp.bfloat16)

    h = x_ref[...]
    h = conv_bn_relu(h, 0 * LANE, 0)
    h = conv_bn_relu(h, 2 * LANE, 1)
    h = conv_bn_relu(h, 4 * LANE, 2)

    # global_mean_pool(h, batch) == P @ h  (dropout is identity in eval mode)
    pooled = jnp.dot(p_ref[...], h, preferred_element_type=jnp.float32)     # [Bp,128] f32

    z = jnp.dot(pooled.astype(jnp.bfloat16), w_ref[6 * LANE:7 * LANE, :],
                preferred_element_type=jnp.float32) + b_ref[3:4, :]
    z = jnp.maximum(z, 0.0)
    z = jnp.dot(z.astype(jnp.bfloat16), w_ref[7 * LANE:8 * LANE, :],
                preferred_element_type=jnp.float32) + b_ref[4:5, :]
    out_ref[...] = jnp.maximum(z, 0.0)                                      # lane-dense store


# --------------------------------------------------------------------------
# Parameters (shapes match model4.__init__) + host-side fold / pad / pack
# --------------------------------------------------------------------------
def init_params(features_channels, hidden_channels, seed_model):
    """Deterministic synthetic parameters (PyTorch-like shapes, stored (in, out))."""
    key = jax.random.PRNGKey(seed_model)
    keys = jax.random.split(key, 16)

    def w(k, shape, fan_in):
        bound = 1.0 / math.sqrt(fan_in)
        return jax.random.uniform(k, shape, jnp.float32, -bound, bound)

    F_, H = features_channels, hidden_channels
    return {
        # GraphConv 1..3: lin_rel (with bias), lin_root (no bias)
        "w1_rel": w(keys[0], (F_, H), F_), "b1_rel": w(keys[1], (1, H), F_),
        "w1_root": w(keys[2], (F_, H), F_),
        "w2_rel": w(keys[3], (H, H), H), "b2_rel": w(keys[4], (1, H), H),
        "w2_root": w(keys[5], (H, H), H),
        "w3_rel": w(keys[6], (H, H), H), "b3_rel": w(keys[7], (1, H), H),
        "w3_root": w(keys[8], (H, H), H),
        # BatchNorm affine (PyTorch init: gamma=1, beta=0)
        "bn1_g": jnp.ones((1, H), jnp.float32), "bn1_b": jnp.zeros((1, H), jnp.float32),
        "bn2_g": jnp.ones((1, H), jnp.float32), "bn2_b": jnp.zeros((1, H), jnp.float32),
        "bn3_g": jnp.ones((1, H), jnp.float32), "bn3_b": jnp.zeros((1, H), jnp.float32),
        # lin1: H -> 16, lin2: 16 -> 1
        "wl1": w(keys[9], (H, 16), H), "bl1": w(keys[10], (1, 16), H),
        "wl2": w(keys[11], (16, 1), 16), "bl2": w(keys[12], (1, 1), 16),
    }


def _pad2d(x, rows, cols):
    r, c = x.shape
    return jnp.pad(x, ((0, rows - r), (0, cols - c)))


def fold_and_pack_params(params):
    """Fold eval-mode BN into the conv weights, zero-pad every lane dim to 128,
    stack [W_rel; W_root] per layer, and pack everything into two slabs."""
    inv_std = 1.0 / math.sqrt(1.0 + _BN_EPS)

    def fold_layer(w_rel, b_rel, w_root, gamma, beta):
        s = gamma * inv_std                                   # [1, H]
        w_cat = jnp.concatenate([_pad2d(w_rel * s, LANE, LANE),
                                 _pad2d(w_root * s, LANE, LANE)], axis=0)
        b_fold = _pad2d(b_rel * s + beta, 1, LANE)
        return w_cat, b_fold

    w1, b1 = fold_layer(params["w1_rel"], params["b1_rel"], params["w1_root"],
                        params["bn1_g"], params["bn1_b"])
    w2, b2 = fold_layer(params["w2_rel"], params["b2_rel"], params["w2_root"],
                        params["bn2_g"], params["bn2_b"])
    w3, b3 = fold_layer(params["w3_rel"], params["b3_rel"], params["w3_root"],
                        params["bn3_g"], params["bn3_b"])

    wl1 = _pad2d(params["wl1"], LANE, LANE)
    wl2 = _pad2d(params["wl2"], LANE, LANE)
    bl1 = _pad2d(params["bl1"], 1, LANE)
    bl2 = _pad2d(params["bl2"], 1, LANE)

    w_slab = jnp.concatenate([w1, w2, w3, wl1, wl2], axis=0).astype(jnp.bfloat16)
    b_slab = jnp.concatenate(
        [b1, b2, b3, bl1, bl2, jnp.zeros((3, LANE), jnp.float32)], axis=0)
    return w_slab, b_slab   # [1024,128] bf16, [8,128] f32


# --------------------------------------------------------------------------
# Forward wrapper
# --------------------------------------------------------------------------
def model4_forward(x, edge_index, edge_attr, batch, params, num_graphs):
    """x: [N,F] f32, edge_index: [2,E] int32, edge_attr: [E] f32, batch: [N] int32.
    Returns [num_graphs, 1] float32 (eval-mode forward)."""
    N, F_ = x.shape
    N_pad = max(LANE, ((N + LANE - 1) // LANE) * LANE)
    B_pad = max(8, ((num_graphs + 7) // 8) * 8)

    src, dst = edge_index[0], edge_index[1]
    # Dense weighted adjacency, built directly at padded size (extra rows/cols = 0).
    A = jnp.zeros((N_pad, N_pad), jnp.float32).at[dst, src].add(
        edge_attr.astype(jnp.float32))

    Xp = jnp.zeros((N_pad, LANE), jnp.float32).at[:N, :F_].set(x.astype(jnp.float32))

    onehot = (batch[None, :] == jnp.arange(num_graphs)[:, None]).astype(jnp.float32)
    counts = jnp.maximum(onehot.sum(axis=1, keepdims=True), 1.0)
    Pp = jnp.zeros((B_pad, N_pad), jnp.float32).at[:num_graphs, :N].set(onehot / counts)

    w_slab, b_slab = fold_and_pack_params(params)

    vmem = pl.BlockSpec(memory_space=pltpu.MemorySpace.VMEM)
    out = pl.pallas_call(
        _gcn_forward_kernel,
        out_shape=jax.ShapeDtypeStruct((B_pad, LANE), jnp.float32),
        in_specs=[vmem] * 5,
        out_specs=vmem,
    )(A.astype(jnp.bfloat16),
      Xp.astype(jnp.bfloat16),
      Pp.astype(jnp.bfloat16),
      w_slab, b_slab)

    return out[:num_graphs, :1]


# Pure-JAX float32 reference (same eval-mode semantics) for a sanity check.
def model4_reference(x, edge_index, edge_attr, batch, params, num_graphs):
    inv_std = 1.0 / math.sqrt(1.0 + _BN_EPS)
    N = x.shape[0]
    src, dst = edge_index[0], edge_index[1]
    A = jnp.zeros((N, N), jnp.float32).at[dst, src].add(edge_attr.astype(jnp.float32))
    h = x.astype(jnp.float32)

    def layer(h, w_rel, b_rel, w_root, g, b):
        out = (A @ h) @ w_rel + b_rel + h @ w_root
        out = g * (out * inv_std) + b
        return jnp.maximum(out, 0.0)

    h = layer(h, params["w1_rel"], params["b1_rel"], params["w1_root"],
              params["bn1_g"], params["bn1_b"])
    h = layer(h, params["w2_rel"], params["b2_rel"], params["w2_root"],
              params["bn2_g"], params["bn2_b"])
    h = layer(h, params["w3_rel"], params["b3_rel"], params["w3_root"],
              params["bn3_g"], params["bn3_b"])

    onehot = (batch[None, :] == jnp.arange(num_graphs)[:, None]).astype(jnp.float32)
    counts = jnp.maximum(onehot.sum(axis=1, keepdims=True), 1.0)
    pooled = (onehot / counts) @ h
    z = jnp.maximum(pooled @ params["wl1"] + params["bl1"], 0.0)
    z = jnp.maximum(z @ params["wl2"] + params["bl2"], 0.0)
    return z


if __name__ == "__main__":
    # Small synthetic graph batch: 2 graphs, 8 nodes each, 8 input features,
    # hidden_channels=32.
    N_PER_GRAPH = 8
    NUM_GRAPHS = 2
    N = N_PER_GRAPH * NUM_GRAPHS
    F_IN = 8
    HIDDEN = 32
    E_PER_GRAPH = 20
    E = E_PER_GRAPH * NUM_GRAPHS

    key = jax.random.PRNGKey(0)
    kx, ks0, kd0, ks1, kd1, kw = jax.random.split(key, 6)

    x = jax.random.normal(kx, (N, F_IN), jnp.float32)

    # Edges kept strictly inside each graph (dense-A trick requires this).
    src0 = jax.random.randint(ks0, (E_PER_GRAPH,), 0, N_PER_GRAPH)
    dst0 = jax.random.randint(kd0, (E_PER_GRAPH,), 0, N_PER_GRAPH)
    src1 = jax.random.randint(ks1, (E_PER_GRAPH,), N_PER_GRAPH, N)
    dst1 = jax.random.randint(kd1, (E_PER_GRAPH,), N_PER_GRAPH, N)
    edge_index = jnp.stack(
        [jnp.concatenate([src0, src1]), jnp.concatenate([dst0, dst1])]
    ).astype(jnp.int32)
    edge_attr = jax.random.uniform(kw, (E,), jnp.float32, 0.1, 1.0)

    batch = jnp.concatenate(
        [jnp.zeros((N_PER_GRAPH,), jnp.int32), jnp.ones((N_PER_GRAPH,), jnp.int32)]
    )

    params = init_params(F_IN, HIDDEN, seed_model=12345)

    # TODO(synk): training-mode dropout and BatchNorm batch statistics are not
    # implemented; this kernel realizes eval-mode semantics.
    out = model4_forward(x, edge_index, edge_attr, batch, params, NUM_GRAPHS)
    out = jax.block_until_ready(out)
    assert out.shape == (NUM_GRAPHS, 1)

    ref = jax.block_until_ready(
        model4_reference(x, edge_index, edge_attr, batch, params, NUM_GRAPHS))
    assert bool(jnp.allclose(out, ref, rtol=1e-1, atol=1e-1)), (out, ref)

    print("KERNEL_OK")
</pallas_src>

<mosaic_0001>
module attributes {stable_mosaic.version = 11 : i64} {
  func.func @_gcn_forward_kernel(%arg0: memref<128x128xbf16, #tpu.memory_space<vmem>>, %arg1: memref<128x128xbf16, #tpu.memory_space<vmem>>, %arg2: memref<8x128xbf16, #tpu.memory_space<vmem>>, %arg3: memref<1024x128xbf16, #tpu.memory_space<vmem>>, %arg4: memref<8x128xf32, #tpu.memory_space<vmem>>, %arg5: memref<8x128xf32, #tpu.memory_space<vmem>>) attributes {dimension_semantics = [], scalar_prefetch = 0 : i64, scratch_operands = 0 : i64, tpu.core_type = #tpu.core_type<tc>} {
    %c0 = arith.constant 0 : index
    %c0_0 = arith.constant 0 : index
    %0 = vector.load %arg0[%c0, %c0_0] : memref<128x128xbf16, #tpu.memory_space<vmem>>, vector<128x128xbf16>
    %c0_1 = arith.constant 0 : index
    %c0_2 = arith.constant 0 : index
    %1 = vector.load %arg1[%c0_1, %c0_2] : memref<128x128xbf16, #tpu.memory_space<vmem>>, vector<128x128xbf16>
    %cst = arith.constant dense<0.000000e+00> : vector<128x128xf32>
    %2 = tpu.matmul %0, %1, %cst {dimension_numbers = #tpu.dot_dimension_numbers<[1], [0], [0], [1], [0, 0, 1, 1], [], []>} : vector<128x128xbf16>, vector<128x128xbf16>, vector<128x128xf32> -> vector<128x128xf32>
    %3 = arith.truncf %2 : vector<128x128xf32> to vector<128x128xbf16>
    %4 = tpu.concatenate %3, %1 in 1 : vector<128x128xbf16>, vector<128x128xbf16> -> vector<128x256xbf16>
    %c0_3 = arith.constant 0 : index
    %c0_4 = arith.constant 0 : index
    %5 = vector.load %arg3[%c0_3, %c0_4] : memref<1024x128xbf16, #tpu.memory_space<vmem>>, vector<256x128xbf16>
    %cst_5 = arith.constant dense<0.000000e+00> : vector<128x128xf32>
    %6 = tpu.matmul %4, %5, %cst_5 {dimension_numbers = #tpu.dot_dimension_numbers<[1], [0], [0], [1], [0, 0, 1, 1], [], []>} : vector<128x256xbf16>, vector<256x128xbf16>, vector<128x128xf32> -> vector<128x128xf32>
    %c0_6 = arith.constant 0 : index
    %c0_7 = arith.constant 0 : index
    %7 = vector.load %arg4[%c0_6, %c0_7] : memref<8x128xf32, #tpu.memory_space<vmem>>, vector<1x128xf32>
    %8 = vector.broadcast %7 : vector<1x128xf32> to vector<128x128xf32>
    %9 = arith.addf %6, %8 : vector<128x128xf32>
    %cst_8 = arith.constant 0.000000e+00 : f32
    %10 = vector.broadcast %cst_8 : f32 to vector<128x128xf32>
    %11 = arith.maximumf %9, %10 : vector<128x128xf32>
    %12 = arith.truncf %11 : vector<128x128xf32> to vector<128x128xbf16>
    %cst_9 = arith.constant dense<0.000000e+00> : vector<128x128xf32>
    %13 = tpu.matmul %0, %12, %cst_9 {dimension_numbers = #tpu.dot_dimension_numbers<[1], [0], [0], [1], [0, 0, 1, 1], [], []>} : vector<128x128xbf16>, vector<128x128xbf16>, vector<128x128xf32> -> vector<128x128xf32>
    %14 = arith.truncf %13 : vector<128x128xf32> to vector<128x128xbf16>
    %15 = tpu.concatenate %14, %12 in 1 : vector<128x128xbf16>, vector<128x128xbf16> -> vector<128x256xbf16>
    %c256 = arith.constant 256 : index
    %c0_10 = arith.constant 0 : index
    %16 = vector.load %arg3[%c256, %c0_10] : memref<1024x128xbf16, #tpu.memory_space<vmem>>, vector<256x128xbf16>
    %cst_11 = arith.constant dense<0.000000e+00> : vector<128x128xf32>
    %17 = tpu.matmul %15, %16, %cst_11 {dimension_numbers = #tpu.dot_dimension_numbers<[1], [0], [0], [1], [0, 0, 1, 1], [], []>} : vector<128x256xbf16>, vector<256x128xbf16>, vector<128x128xf32> -> vector<128x128xf32>
    %c1 = arith.constant 1 : index
    %c0_12 = arith.constant 0 : index
    %18 = vector.load %arg4[%c1, %c0_12] : memref<8x128xf32, #tpu.memory_space<vmem>>, vector<1x128xf32>
    %19 = vector.broadcast %18 : vector<1x128xf32> to vector<128x128xf32>
    %20 = arith.addf %17, %19 : vector<128x128xf32>
    %cst_13 = arith.constant 0.000000e+00 : f32
    %21 = vector.broadcast %cst_13 : f32 to vector<128x128xf32>
    %22 = arith.maximumf %20, %21 : vector<128x128xf32>
    %23 = arith.truncf %22 : vector<128x128xf32> to vector<128x128xbf16>
    %cst_14 = arith.constant dense<0.000000e+00> : vector<128x128xf32>
    %24 = tpu.matmul %0, %23, %cst_14 {dimension_numbers = #tpu.dot_dimension_numbers<[1], [0], [0], [1], [0, 0, 1, 1], [], []>} : vector<128x128xbf16>, vector<128x128xbf16>, vector<128x128xf32> -> vector<128x128xf32>
    %25 = arith.truncf %24 : vector<128x128xf32> to vector<128x128xbf16>
    %26 = tpu.concatenate %25, %23 in 1 : vector<128x128xbf16>, vector<128x128xbf16> -> vector<128x256xbf16>
    %c512 = arith.constant 512 : index
    %c0_15 = arith.constant 0 : index
    %27 = vector.load %arg3[%c512, %c0_15] : memref<1024x128xbf16, #tpu.memory_space<vmem>>, vector<256x128xbf16>
    %cst_16 = arith.constant dense<0.000000e+00> : vector<128x128xf32>
    %28 = tpu.matmul %26, %27, %cst_16 {dimension_numbers = #tpu.dot_dimension_numbers<[1], [0], [0], [1], [0, 0, 1, 1], [], []>} : vector<128x256xbf16>, vector<256x128xbf16>, vector<128x128xf32> -> vector<128x128xf32>
    %c2 = arith.constant 2 : index
    %c0_17 = arith.constant 0 : index
    %29 = vector.load %arg4[%c2, %c0_17] : memref<8x128xf32, #tpu.memory_space<vmem>>, vector<1x128xf32>
    %30 = vector.broadcast %29 : vector<1x128xf32> to vector<128x128xf32>
    %31 = arith.addf %28, %30 : vector<128x128xf32>
    %cst_18 = arith.constant 0.000000e+00 : f32
    %32 = vector.broadcast %cst_18 : f32 to vector<128x128xf32>
    %33 = arith.maximumf %31, %32 : vector<128x128xf32>
    %34 = arith.truncf %33 : vector<128x128xf32> to vector<128x128xbf16>
    %c0_19 = arith.constant 0 : index
    %c0_20 = arith.constant 0 : index
    %35 = vector.load %arg2[%c0_19, %c0_20] : memref<8x128xbf16, #tpu.memory_space<vmem>>, vector<8x128xbf16>
    %cst_21 = arith.constant dense<0.000000e+00> : vector<8x128xf32>
    %36 = tpu.matmul %35, %34, %cst_21 {dimension_numbers = #tpu.dot_dimension_numbers<[1], [0], [0], [1], [0, 0, 1, 1], [], []>} : vector<8x128xbf16>, vector<128x128xbf16>, vector<8x128xf32> -> vector<8x128xf32>
    %37 = arith.truncf %36 : vector<8x128xf32> to vector<8x128xbf16>
    %c768 = arith.constant 768 : index
    %c0_22 = arith.constant 0 : index
    %38 = vector.load %arg3[%c768, %c0_22] : memref<1024x128xbf16, #tpu.memory_space<vmem>>, vector<128x128xbf16>
    %cst_23 = arith.constant dense<0.000000e+00> : vector<8x128xf32>
    %39 = tpu.matmul %37, %38, %cst_23 {dimension_numbers = #tpu.dot_dimension_numbers<[1], [0], [0], [1], [0, 0, 1, 1], [], []>} : vector<8x128xbf16>, vector<128x128xbf16>, vector<8x128xf32> -> vector<8x128xf32>
    %c3 = arith.constant 3 : index
    %c0_24 = arith.constant 0 : index
    %40 = vector.load %arg4[%c3, %c0_24] : memref<8x128xf32, #tpu.memory_space<vmem>>, vector<1x128xf32>
    %41 = vector.broadcast %40 : vector<1x128xf32> to vector<8x128xf32>
    %42 = arith.addf %39, %41 : vector<8x128xf32>
    %cst_25 = arith.constant 0.000000e+00 : f32
    %43 = vector.broadcast %cst_25 : f32 to vector<8x128xf32>
    %44 = arith.maximumf %42, %43 : vector<8x128xf32>
    %45 = arith.truncf %44 : vector<8x128xf32> to vector<8x128xbf16>
    %c896 = arith.constant 896 : index
    %c0_26 = arith.constant 0 : index
    %46 = vector.load %arg3[%c896, %c0_26] : memref<1024x128xbf16, #tpu.memory_space<vmem>>, vector<128x128xbf16>
    %cst_27 = arith.constant dense<0.000000e+00> : vector<8x128xf32>
    %47 = tpu.matmul %45, %46, %cst_27 {dimension_numbers = #tpu.dot_dimension_numbers<[1], [0], [0], [1], [0, 0, 1, 1], [], []>} : vector<8x128xbf16>, vector<128x128xbf16>, vector<8x128xf32> -> vector<8x128xf32>
    %c4 = arith.constant 4 : index
    %c0_28 = arith.constant 0 : index
    %48 = vector.load %arg4[%c4, %c0_28] : memref<8x128xf32, #tpu.memory_space<vmem>>, vector<1x128xf32>
    %49 = vector.broadcast %48 : vector<1x128xf32> to vector<8x128xf32>
    %50 = arith.addf %47, %49 : vector<8x128xf32>
    %cst_29 = arith.constant 0.000000e+00 : f32
    %51 = vector.broadcast %cst_29 : f32 to vector<8x128xf32>
    %52 = arith.maximumf %50, %51 : vector<8x128xf32>
    %c0_30 = arith.constant 0 : index
    %c0_31 = arith.constant 0 : index
    %53 = vector.load %arg5[%c0_30, %c0_31] : memref<8x128xf32, #tpu.memory_space<vmem>>, vector<8x128xf32>
    tpu.vector_store %arg5[%c0_30, %c0_31], %52 {strides = array<i32>} : memref<8x128xf32, #tpu.memory_space<vmem>>, vector<8x128xf32>,
    return
  }
}

</mosaic_0001>

<llo_original>
// kernel: tpu_custom_call.1
$region0: #{tpu_custom_call.1}
  #allocation0 [shape = 'u32[]', space=smem, size = 0x4, offset = 0x4, fixed_abs, tag = 'smem constant byte address 0x4 - core index']
  #allocation1 [shape = 'u32[144,128]{1,0:T(1,128)}', space=vmem, size = 0x12000, scoped, tag = 'internal scratch']
  %s0 = inlined_call_operand.hbm [shape: bf16[128,128], index: 0, kind: input, shape index: {}]
  %s1 = inlined_call_operand.hbm [shape: bf16[128,128], index: 1, kind: input, shape index: {}]
  %s2 = inlined_call_operand.vmem [shape: bf16[8,128], index: 2, kind: input, shape index: {}]
  %s3 = inlined_call_operand.hbm [shape: bf16[1024,128], index: 3, kind: input, shape index: {}]
  %s4 = inlined_call_operand.vmem [shape: f32[8,128], index: 4, kind: input, shape index: {}]
  %s5 = inlined_call_operand.hbm [shape: f32[8,128], index: 5, kind: output, shape index: {}]
  %s6 = sld [smem:[#allocation0]]
  $region42: #{tpu_custom_call.1} parent=0
    _
  %s8 = ssub.s32 1, %s6
  %s9 = scalar_select 0, %s8, %s6
  $region1: #{tpu_custom_call.1} parent=0
    #allocation2 [shape = 'u8[32768]{0}', space=vmem, size = 0x8000, scoped, tag = 'input window, operand 0, single buffered']
    #allocation3 [shape = 's32[1]{0}', space=sflag, size = 0x4, scoped, tag = 'scoped memory for tpu_custom_call.1']
    #allocation4 [shape = 's32[1]{0}', space=sflag, size = 0x4, scoped, tag = 'scoped memory for tpu_custom_call.1']
    #allocation5 [shape = 'u8[32768]{0}', space=vmem, size = 0x8000, scoped, tag = 'input window, operand 1, single buffered']
    #allocation6 [shape = 's32[1]{0}', space=sflag, size = 0x4, scoped, tag = 'scoped memory for tpu_custom_call.1']
    #allocation7 [shape = 'u8[262144]{0}', space=vmem, size = 0x40000, scoped, tag = 'input window, operand 3, single buffered']
    #allocation8 [shape = 'u8[4096]{0}', space=vmem, size = 0x1000, scoped, tag = 'output window, operand 0, single buffered']
    %10 = vsyncpa [#allocation3], 0
    %11 = vsyncpa [#allocation6], 0
    %12 = vsyncpa [#allocation4], 0
    // Predicated region
    $region2: #{tpu_custom_call.1} parent=1 // pred_check
      _
    $region3: #{tpu_custom_call.1} parent=1 // pred_check_branch
      %14 = sbr.rel (0) target = $region5
    $region4: #{tpu_custom_call.1} parent=1 // pred_region
      %s16 = ssub.s32 1024, 1024
      %17 = vsyncadd [#allocation3], %s16
      %s18 = sshll.u32 [#allocation2], 4
      %s19 = int_to_ptr.vmem [resolvable:$true] %s18
      %24 = dma.hbm_to_vmem [thread:$0]  %s0, 1024, %s19, [#allocation3], 64, 64, 4
    $region5: #{tpu_custom_call.1} parent=1 // pred_fallthru
      _
    // Predicated region
    $region6: #{tpu_custom_call.1} parent=1 // pred_check
      _
    $region7: #{tpu_custom_call.1} parent=1 // pred_check_branch
      %26 = sbr.rel (0) target = $region9
    $region8: #{tpu_custom_call.1} parent=1 // pred_region
      %s28 = ssub.s32 1024, 1024
      %29 = vsyncadd [#allocation6], %s28
      %s30 = sshll.u32 [#allocation5], 4
      %s31 = int_to_ptr.vmem [resolvable:$true] %s30
      %36 = dma.hbm_to_vmem [thread:$0]  %s1, 1024, %s31, [#allocation6], 64, 64, 4
    $region9: #{tpu_custom_call.1} parent=1 // pred_fallthru
      _
    // Predicated region
    $region10: #{tpu_custom_call.1} parent=1 // pred_check
      _
    $region11: #{tpu_custom_call.1} parent=1 // pred_check_branch
      %38 = sbr.rel (0) target = $region13
    $region12: #{tpu_custom_call.1} parent=1 // pred_region
      _
    $region13: #{tpu_custom_call.1} parent=1 // pred_fallthru
      _
    // Predicated region
    $region14: #{tpu_custom_call.1} parent=1 // pred_check
      _
    $region15: #{tpu_custom_call.1} parent=1 // pred_check_branch
      %40 = sbr.rel (0) target = $region17
    $region16: #{tpu_custom_call.1} parent=1 // pred_region
      %s42 = ssub.s32 8192, 8192
      %43 = vsyncadd [#allocation6], %s42
      %s44 = sshll.u32 [#allocation7], 4
      %s45 = int_to_ptr.vmem [resolvable:$true] %s44
      %50 = dma.hbm_to_vmem [thread:$0]  %s3, 8192, %s45, [#allocation6], 64, 64, 4
    $region17: #{tpu_custom_call.1} parent=1 // pred_fallthru
      _
    // Predicated region
    $region18: #{tpu_custom_call.1} parent=1 // pred_check
      _
    $region19: #{tpu_custom_call.1} parent=1 // pred_check_branch
      %52 = sbr.rel (0) target = $region21
    $region20: #{tpu_custom_call.1} parent=1 // pred_region
      _
    $region21: #{tpu_custom_call.1} parent=1 // pred_fallthru
      _
    // Predicated region
    $region22: #{tpu_custom_call.1} parent=1 // pred_check
      _
    $region23: #{tpu_custom_call.1} parent=1 // pred_check_branch
      %54 = sbr.rel (0) target = $region25
    $region24: #{tpu_custom_call.1} parent=1 // pred_region
      %55 = dma.done [#allocation3], 1024
    $region25: #{tpu_custom_call.1} parent=1 // pred_fallthru
      _
    // Predicated region
    $region26: #{tpu_custom_call.1} parent=1 // pred_check
      _
    $region27: #{tpu_custom_call.1} parent=1 // pred_check_branch
      %57 = sbr.rel (0) target = $region29
    $region28: #{tpu_custom_call.1} parent=1 // pred_region
      %58 = dma.done [#allocation6], 1024
    $region29: #{tpu_custom_call.1} parent=1 // pred_fallthru
      _
    // Predicated region
    $region30: #{tpu_custom_call.1} parent=1 // pred_check
      _
    $region31: #{tpu_custom_call.1} parent=1 // pred_check_branch
      %60 = sbr.rel (0) target = $region33
    $region32: #{tpu_custom_call.1} parent=1 // pred_region
      %61 = dma.done [#allocation6], 8192
    $region33: #{tpu_custom_call.1} parent=1 // pred_fallthru
      _
    %v63 = vld [vmem:[#allocation2] sm:$0xf]
    %v64 = vld [vmem:[#allocation2 + $0x4] sm:$0xf]
    %v65 = vld [vmem:[#allocation2 + $0x8] sm:$0xf]
    %v66 = vld [vmem:[#allocation2 + $0xc] sm:$0xf]
    %v67 = vld [vmem:[#allocation2 + $0x10] sm:$0xf]
    %v68 = vld [vmem:[#allocation2 + $0x14] sm:$0xf]
    %v69 = vld [vmem:[#allocation2 + $0x18] sm:$0xf]
    %v70 = vld [vmem:[#allocation2 + $0x1c] sm:$0xf]
    %v71 = vld [vmem:[#allocation2 + $0x20] sm:$0xf]
    %v72 = vld [vmem:[#allocation2 + $0x24] sm:$0xf]
    %v73 = vld [vmem:[#allocation2 + $0x28] sm:$0xf]
    %v74 = vld [vmem:[#allocation2 + $0x2c] sm:$0xf]
    %v75 = vld [vmem:[#allocation2 + $0x30] sm:$0xf]
    %v76 = vld [vmem:[#allocation2 + $0x34] sm:$0xf]
    %v77 = vld [vmem:[#allocation2 + $0x38] sm:$0xf]
    %v78 = vld [vmem:[#allocation2 + $0x3c] sm:$0xf]
    %v79 = vld [vmem:[#allocation5] sm:$0xf]
    %v80 = vld [vmem:[#allocation5 + $0x4] sm:$0xf]
    %v81 = vld [vmem:[#allocation5 + $0x8] sm:$0xf]
    %v82 = vld [vmem:[#allocation5 + $0xc] sm:$0xf]
    %v83 = vld [vmem:[#allocation5 + $0x10] sm:$0xf]
    %v84 = vld [vmem:[#allocation5 + $0x14] sm:$0xf]
    %v85 = vld [vmem:[#allocation5 + $0x18] sm:$0xf]
    %v86 = vld [vmem:[#allocation5 + $0x1c] sm:$0xf]
    %v87 = vld [vmem:[#allocation5 + $0x20] sm:$0xf]
    %v88 = vld [vmem:[#allocation5 + $0x24] sm:$0xf]
    %v89 = vld [vmem:[#allocation5 + $0x28] sm:$0xf]
    %v90 = vld [vmem:[#allocation5 + $0x2c] sm:$0xf]
    %v91 = vld [vmem:[#allocation5 + $0x30] sm:$0xf]
    %v92 = vld [vmem:[#allocation5 + $0x34] sm:$0xf]
    %v93 = vld [vmem:[#allocation5 + $0x38] sm:$0xf]
    %v94 = vld [vmem:[#allocation5 + $0x3c] sm:$0xf]
    %v111 = vunpack.c.l.b16 %v63
    %v112 = vunpack.c.l.b16 %v64
    %v113 = vunpack.c.l.b16 %v65
    %v114 = vunpack.c.l.b16 %v66
    %v115 = vunpack.c.l.b16 %v67
    %v116 = vunpack.c.l.b16 %v68
    %v117 = vunpack.c.l.b16 %v69
    %v118 = vunpack.c.l.b16 %v70
    %v119 = vunpack.c.l.b16 %v71
    %v120 = vunpack.c.l.b16 %v72
    %v121 = vunpack.c.l.b16 %v73
    %v122 = vunpack.c.l.b16 %v74
    %v123 = vunpack.c.l.b16 %v75
    %v124 = vunpack.c.l.b16 %v76
    %v125 = vunpack.c.l.b16 %v77
    %v126 = vunpack.c.l.b16 %v78
    %v127 = vpack.c.b16 %v112, %v111
    %v128 = vpack.c.b16 %v114, %v113
    %v129 = vpack.c.b16 %v116, %v115
    %v130 = vpack.c.b16 %v118, %v117
    %v131 = vpack.c.b16 %v120, %v119
    %v132 = vpack.c.b16 %v122, %v121
    %v133 = vpack.c.b16 %v124, %v123
    %v134 = vpack.c.b16 %v126, %v125
    %v159 = vunpack.c.l.b16 %v79
    %v160 = vunpack.c.l.b16 %v80
    %v161 = vunpack.c.l.b16 %v81
    %v162 = vunpack.c.l.b16 %v82
    %v163 = vunpack.c.l.b16 %v83
    %v164 = vunpack.c.l.b16 %v84
    %v165 = vunpack.c.l.b16 %v85
    %v166 = vunpack.c.l.b16 %v86
    %v167 = vunpack.c.l.b16 %v87
    %v168 = vunpack.c.l.b16 %v88
    %v169 = vunpack.c.l.b16 %v89
    %v170 = vunpack.c.l.b16 %v90
    %v171 = vunpack.c.l.b16 %v91
    %v172 = vunpack.c.l.b16 %v92
    %v173 = vunpack.c.l.b16 %v93
    %v174 = vunpack.c.l.b16 %v94
    %v175 = vpack.c.b16 %v160, %v159
    %v176 = vpack.c.b16 %v162, %v161
    %v177 = vpack.c.b16 %v164, %v163
    %v178 = vpack.c.b16 %v166, %v165
    %v179 = vpack.c.b16 %v168, %v167
    %v180 = vpack.c.b16 %v170, %v169
    %v181 = vpack.c.b16 %v172, %v171
    %v182 = vpack.c.b16 %v174, %v173
    %191 = vmatprep.subr.bf16.mxu0 0
    %192 = vmatpush1.bf16.msra.mxu0 %v175
    %193 = vmatprep.subr.bf16.mxu0 0
    %194 = vmatpush1.bf16.msra.mxu0 %v176
    %195 = vmatprep.subr.bf16.mxu0 0
    %196 = vmatpush1.bf16.msra.mxu0 %v177
    %197 = vmatprep.subr.bf16.mxu0 0
    %198 = vmatpush1.bf16.msra.mxu0 %v178
    %199 = vmatprep.subr.bf16.mxu0 0
    %200 = vmatpush1.bf16.msra.mxu0 %v179
    %201 = vmatprep.subr.bf16.mxu0 0
    %202 = vmatpush1.bf16.msra.mxu0 %v180
    %203 = vmatprep.subr.bf16.mxu0 0
    %204 = vmatpush1.bf16.msra.mxu0 %v181
    %205 = vmatprep.subr.bf16.mxu0 0
    %206 = vmatpush1.bf16.msra.mxu0 %v182
    %207 = vmatprep.subr.bf16.mxu0 0
    %208 = vmatpush1.bf16.msra.mxu0 0
    %209 = vmatprep.subr.bf16.mxu0 0
    %210 = vmatpush1.bf16.msra.mxu0 0
    %211 = vmatprep.subr.bf16.mxu0 0
    %212 = vmatpush1.bf16.msra.mxu0 0
    %213 = vmatprep.subr.bf16.mxu0 0
    %214 = vmatpush1.bf16.msra.mxu0 0
    %215 = vmatprep.subr.bf16.mxu0 0
    %216 = vmatpush1.bf16.msra.mxu0 0
    %217 = vmatprep.subr.bf16.mxu0 0
    %218 = vmatpush1.bf16.msra.mxu0 0
    %219 = vmatprep.subr.bf16.mxu0 0
    %220 = vmatpush1.bf16.msra.mxu0 0
    %221 = vmatprep.subr.bf16.mxu0 0
    %222 = vmatpush1.bf16.msra.mxu0 0
    %223 = vmatprep.mubr.bf16.mxu0 0
    %224 = vmatmul.mubr.bf16.gmra.mrb[0].mxu0 %v127
    %v225 = vpop.f32.mrb[0].mxu0
    %v226 = vadd.f32 0.0, %v225
    %v227 = vpop.f32.mrb[0].mxu0
    %v228 = vpop.f32.mrb[0].mxu0
    %v229 = vadd.f32 0.0, %v228
    %v230 = vpop.f32.mrb[0].mxu0
    %231 = vmatprep.mubr.bf16.mxu0 0
    %232 = vmatmul.mubr.bf16.gmra.mrb[0].mxu0 %v128
    %v233 = vpop.f32.mrb[0].mxu0
    %v234 = vadd.f32 0.0, %v233
    %v235 = vpop.f32.mrb[0].mxu0
    %v236 = vpop.f32.mrb[0].mxu0
    %v237 = vadd.f32 0.0, %v236
    %v238 = vpop.f32.mrb[0].mxu0
    %239 = vmatprep.mubr.bf16.mxu0 0
    %240 = vmatmul.mubr.bf16.gmra.mrb[0].mxu0 %v129
    %v241 = vpop.f32.mrb[0].mxu0
    %v242 = vadd.f32 0.0, %v241
    %v243 = vpop.f32.mrb[0].mxu0
    %v244 = vpop.f32.mrb[0].mxu0
    %v245 = vadd.f32 0.0, %v244
    %v246 = vpop.f32.mrb[0].mxu0
    %247 = vmatprep.mubr.bf16.mxu0 0
    %248 = vmatmul.mubr.bf16.gmra.mrb[0].mxu0 %v130
    %v249 = vpop.f32.mrb[0].mxu0
    %v250 = vadd.f32 0.0, %v249
    %v251 = vpop.f32.mrb[0].mxu0
    %v252 = vpop.f32.mrb[0].mxu0
    %v253 = vadd.f32 0.0, %v252
    %v254 = vpop.f32.mrb[0].mxu0
    %255 = vmatprep.mubr.bf16.mxu0 0
    %256 = vmatmul.mubr.bf16.gmra.mrb[0].mxu0 %v131
    %v257 = vpop.f32.mrb[0].mxu0
    %v258 = vadd.f32 0.0, %v257
    %v259 = vpop.f32.mrb[0].mxu0
    %v260 = vpop.f32.mrb[0].mxu0
    %v261 = vadd.f32 0.0, %v260
    %v262 = vpop.f32.mrb[0].mxu0
    %263 = vmatprep.mubr.bf16.mxu0 0
    %264 = vmatmul.mubr.bf16.gmra.mrb[0].mxu0 %v132
    %v265 = vpop.f32.mrb[0].mxu0
    %v266 = vadd.f32 0.0, %v265
    %v267 = vpop.f32.mrb[0].mxu0
    %v268 = vpop.f32.mrb[0].mxu0
    %v269 = vadd.f32 0.0, %v268
    %v270 = vpop.f32.mrb[0].mxu0
    %271 = vmatprep.mubr.bf16.mxu0 0
    %272 = vmatmul.mubr.bf16.gmra.mrb[0].mxu0 %v133
    %v273 = vpop.f32.mrb[0].mxu0
    %v274 = vadd.f32 0.0, %v273
    %v275 = vpop.f32.mrb[0].mxu0
    %v276 = vpop.f32.mrb[0].mxu0
    %v277 = vadd.f32 0.0, %v276
    %v278 = vpop.f32.mrb[0].mxu0
    %279 = vmatprep.mubr.bf16.mxu0 0
    %280 = vmatmul.mubr.bf16.gmra.mrb[0].mxu0 %v134
    %v281 = vpop.f32.mrb[0].mxu0
    %v282 = vadd.f32 0.0, %v281
    %v283 = vpop.f32.mrb[0].mxu0
    %v284 = vpop.f32.mrb[0].mxu0
    %v285 = vadd.f32 0.0, %v284
    %v286 = vpop.f32.mrb[0].mxu0
    %287 = vdwg.mxu0
    %v288 = vpack.c.bf16 %v229, %v226
    %v289 = vpack.c.bf16 %v237, %v234
    %v290 = vpack.c.bf16 %v245, %v242
    %v291 = vpack.c.bf16 %v253, %v250
    %v292 = vpack.c.bf16 %v261, %v258
    %v293 = vpack.c.bf16 %v269, %v266
    %v294 = vpack.c.bf16 %v277, %v274
    %v295 = vpack.c.bf16 %v285, %v282
    %v296 = vld [vmem:[#allocation7] sm:$0xf]
    %v297 = vld [vmem:[#allocation7 + $0x4] sm:$0xf]
    %v298 = vld [vmem:[#allocation7 + $0x8] sm:$0xf]
    %v299 = vld [vmem:[#allocation7 + $0xc] sm:$0xf]
    %v300 = vld [vmem:[#allocation7 + $0x10] sm:$0xf]
    %v301 = vld [vmem:[#allocation7 + $0x14] sm:$0xf]
    %v302 = vld [vmem:[#allocation7 + $0x18] sm:$0xf]
    %v303 = vld [vmem:[#allocation7 + $0x1c] sm:$0xf]
    %v304 = vld [vmem:[#allocation7 + $0x20] sm:$0xf]
    %v305 = vld [vmem:[#allocation7 + $0x24] sm:$0xf]
    %v306 = vld [vmem:[#allocation7 + $0x28] sm:$0xf]
    %v307 = vld [vmem:[#allocation7 + $0x2c] sm:$0xf]
    %v308 = vld [vmem:[#allocation7 + $0x30] sm:$0xf]
    %v309 = vld [vmem:[#allocation7 + $0x34] sm:$0xf]
    %v310 = vld [vmem:[#allocation7 + $0x38] sm:$0xf]
    %v311 = vld [vmem:[#allocation7 + $0x3c] sm:$0xf]
    %v312 = vld [vmem:[#allocation7 + $0x40] sm:$0xf]
    %v313 = vld [vmem:[#allocation7 + $0x44] sm:$0xf]
    %v314 = vld [vmem:[#allocation7 + $0x48] sm:$0xf]
    %v315 = vld [vmem:[#allocation7 + $0x4c] sm:$0xf]
    %v316 = vld [vmem:[#allocation7 + $0x50] sm:$0xf]
    %v317 = vld [vmem:[#allocation7 + $0x54] sm:$0xf]
    %v318 = vld [vmem:[#allocation7 + $0x58] sm:$0xf]
    %v319 = vld [vmem:[#allocation7 + $0x5c] sm:$0xf]
    %v320 = vld [vmem:[#allocation7 + $0x60] sm:$0xf]
    %v321 = vld [vmem:[#allocation7 + $0x64] sm:$0xf]
    %v322 = vld [vmem:[#allocation7 + $0x68] sm:$0xf]
    %v323 = vld [vmem:[#allocation7 + $0x6c] sm:$0xf]
    %v324 = vld [vmem:[#allocation7 + $0x70] sm:$0xf]
    %v325 = vld [vmem:[#allocation7 + $0x74] sm:$0xf]
    %v326 = vld [vmem:[#allocation7 + $0x78] sm:$0xf]
    %v327 = vld [vmem:[#allocation7 + $0x7c] sm:$0xf]
    %v328 = vld [vmem:[%s4] sm:$0x1]
    %v329 = vlaneseq
    %v330 = vshrl.u32 %v329, 7
    %v331 = vsub.s32 0, %v330
    %v332 = vrot.slane %v328, %v331
    %v365 = vunpack.c.l.b16 %v296
    %v366 = vunpack.c.l.b16 %v297
    %v367 = vunpack.c.l.b16 %v298
    %v368 = vunpack.c.l.b16 %v299
    %v369 = vunpack.c.l.b16 %v300
    %v370 = vunpack.c.l.b16 %v301
    %v371 = vunpack.c.l.b16 %v302
    %v372 = vunpack.c.l.b16 %v303
    %v373 = vunpack.c.l.b16 %v304
    %v374 = vunpack.c.l.b16 %v305
    %v375 = vunpack.c.l.b16 %v306
    %v376 = vunpack.c.l.b16 %v307
    %v377 = vunpack.c.l.b16 %v308
    %v378 = vunpack.c.l.b16 %v309
    %v379 = vunpack.c.l.b16 %v310
    %v380 = vunpack.c.l.b16 %v311
    %v381 = vunpack.c.l.b16 %v312
    %v382 = vunpack.c.l.b16 %v313
    %v383 = vunpack.c.l.b16 %v314
    %v384 = vunpack.c.l.b16 %v315
    %v385 = vunpack.c.l.b16 %v316
    %v386 = vunpack.c.l.b16 %v317
    %v387 = vunpack.c.l.b16 %v318
    %v388 = vunpack.c.l.b16 %v319
    %v389 = vunpack.c.l.b16 %v320
    %v390 = vunpack.c.l.b16 %v321
    %v391 = vunpack.c.l.b16 %v322
    %v392 = vunpack.c.l.b16 %v323
    %v393 = vunpack.c.l.b16 %v324
    %v394 = vunpack.c.l.b16 %v325
    %v395 = vunpack.c.l.b16 %v326
    %v396 = vunpack.c.l.b16 %v327
    %v397 = vpack.c.b16 %v366, %v365
    %v398 = vpack.c.b16 %v368, %v367
    %v399 = vpack.c.b16 %v370, %v369
    %v400 = vpack.c.b16 %v372, %v371
    %v401 = vpack.c.b16 %v374, %v373
    %v402 = vpack.c.b16 %v376, %v375
    %v403 = vpack.c.b16 %v378, %v377
    %v404 = vpack.c.b16 %v380, %v379
    %v405 = vpack.c.b16 %v382, %v381
    %v406 = vpack.c.b16 %v384, %v383
    %v407 = vpack.c.b16 %v386, %v385
    %v408 = vpack.c.b16 %v388, %v387
    %v409 = vpack.c.b16 %v390, %v389
    %v410 = vpack.c.b16 %v392, %v391
    %v411 = vpack.c.b16 %v394, %v393
    %v412 = vpack.c.b16 %v396, %v395
    %429 = vmatprep.subr.bf16.mxu0 0
    %430 = vmatpush1.bf16.msra.mxu0 %v397
    %431 = vmatprep.subr.bf16.mxu0 0
    %432 = vmatpush1.bf16.msra.mxu0 %v398
    %433 = vmatprep.subr.bf16.mxu0 0
    %434 = vmatpush1.bf16.msra.mxu0 %v399
    %435 = vmatprep.subr.bf16.mxu0 0
    %436 = vmatpush1.bf16.msra.mxu0 %v400
    %437 = vmatprep.subr.bf16.mxu0 0
    %438 = vmatpush1.bf16.msra.mxu0 %v401
    %439 = vmatprep.subr.bf16.mxu0 0
    %440 = vmatpush1.bf16.msra.mxu0 %v402
    %441 = vmatprep.subr.bf16.mxu0 0
    %442 = vmatpush1.bf16.msra.mxu0 %v403
    %443 = vmatprep.subr.bf16.mxu0 0
    %444 = vmatpush1.bf16.msra.mxu0 %v404
    %445 = vmatprep.subr.bf16.mxu0 0
    %446 = vmatpush1.bf16.msra.mxu0 %v405
    %447 = vmatprep.subr.bf16.mxu0 0
    %448 = vmatpush1.bf16.msra.mxu0 %v406
    %449 = vmatprep.subr.bf16.mxu0 0
    %450 = vmatpush1.bf16.msra.mxu0 %v407
    %451 = vmatprep.subr.bf16.mxu0 0
    %452 = vmatpush1.bf16.msra.mxu0 %v408
    %453 = vmatprep.subr.bf16.mxu0 0
    %454 = vmatpush1.bf16.msra.mxu0 %v409
    %455 = vmatprep.subr.bf16.mxu0 0
    %456 = vmatpush1.bf16.msra.mxu0 %v410
    %457 = vmatprep.subr.bf16.mxu0 0
    %458 = vmatpush1.bf16.msra.mxu0 %v411
    %459 = vmatprep.subr.bf16.mxu0 0
    %460 = vmatpush1.bf16.msra.mxu0 %v412
    %461 = vmatprep.mubr.bf16.mxu0 %v175
    %462 = vmatmul.mubr.bf16.gmra.mrb[0].mxu0 %v288
    %v463 = vpop.f32.mrb[0].mxu0
    %v464 = vadd.f32 %v332, %v463
    %v465 = vpop.f32.mrb[0].mxu0
    %v466 = vpop.f32.mrb[0].mxu0
    %v467 = vadd.f32 %v332, %v466
    %v468 = vpop.f32.mrb[0].mxu0
    %469 = vmatprep.mubr.bf16.mxu0 %v176
    %470 = vmatmul.mubr.bf16.gmra.mrb[0].mxu0 %v289
    %v471 = vpop.f32.mrb[0].mxu0
    %v472 = vadd.f32 %v332, %v471
    %v473 = vpop.f32.mrb[0].mxu0
    %v474 = vpop.f32.mrb[0].mxu0
    %v475 = vadd.f32 %v332, %v474
    %v476 = vpop.f32.mrb[0].mxu0
    %477 = vmatprep.mubr.bf16.mxu0 %v177
    %478 = vmatmul.mubr.bf16.gmra.mrb[0].mxu0 %v290
    %v479 = vpop.f32.mrb[0].mxu0
    %v480 = vadd.f32 %v332, %v479
    %v481 = vpop.f32.mrb[0].mxu0
    %v482 = vpop.f32.mrb[0].mxu0
    %v483 = vadd.f32 %v332, %v482
    %v484 = vpop.f32.mrb[0].mxu0
    %485 = vmatprep.mubr.bf16.mxu0 %v178
    %486 = vmatmul.mubr.bf16.gmra.mrb[0].mxu0 %v291
    %v487 = vpop.f32.mrb[0].mxu0
    %v488 = vadd.f32 %v332, %v487
    %v489 = vpop.f32.mrb[0].mxu0
    %v490 = vpop.f32.mrb[0].mxu0
    %v491 = vadd.f32 %v332, %v490
    %v492 = vpop.f32.mrb[0].mxu0
    %493 = vmatprep.mubr.bf16.mxu0 %v179
    %494 = vmatmul.mubr.bf16.gmra.mrb[0].mxu0 %v292
    %v495 = vpop.f32.mrb[0].mxu0
    %v496 = vadd.f32 %v332, %v495
    %v497 = vpop.f32.mrb[0].mxu0
    %v498 = vpop.f32.mrb[0].mxu0
    %v499 = vadd.f32 %v332, %v498
    %v500 = vpop.f32.mrb[0].mxu0
    %501 = vmatprep.mubr.bf16.mxu0 %v180
    %502 = vmatmul.mubr.bf16.gmra.mrb[0].mxu0 %v293
    %v503 = vpop.f32.mrb[0].mxu0
    %v504 = vadd.f32 %v332, %v503
    %v505 = vpop.f32.mrb[0].mxu0
    %v506 = vpop.f32.mrb[0].mxu0
    %v507 = vadd.f32 %v332, %v506
    %v508 = vpop.f32.mrb[0].mxu0
    %509 = vmatprep.mubr.bf16.mxu0 %v181
    %510 = vmatmul.mubr.bf16.gmra.mrb[0].mxu0 %v294
    %v511 = vpop.f32.mrb[0].mxu0
    %v512 = vadd.f32 %v332, %v511
    %v513 = vpop.f32.mrb[0].mxu0
    %v514 = vpop.f32.mrb[0].mxu0
    %v515 = vadd.f32 %v332, %v514
    %v516 = vpop.f32.mrb[0].mxu0
    %517 = vmatprep.mubr.bf16.mxu0 %v182
    %518 = vmatmul.mubr.bf16.gmra.mrb[0].mxu0 %v295
    %v519 = vpop.f32.mrb[0].mxu0
    %v520 = vadd.f32 %v332, %v519
    %v521 = vpop.f32.mrb[0].mxu0
    %v522 = vpop.f32.mrb[0].mxu0
    %v523 = vadd.f32 %v332, %v522
    %v524 = vpop.f32.mrb[0].mxu0
    %525 = vdwg.mxu0
    %v526 = vmax.f32 %v464, 0.0
    %v527 = vmax.f32 %v467, 0.0
    %v528 = vmax.f32 %v472, 0.0
    %v529 = vmax.f32 %v475, 0.0
    %v530 = vmax.f32 %v480, 0.0
    %v531 = vmax.f32 %v483, 0.0
    %v532 = vmax.f32 %v488, 0.0
    %v533 = vmax.f32 %v491, 0.0
    %v534 = vmax.f32 %v496, 0.0
    %v535 = vmax.f32 %v499, 0.0
    %v536 = vmax.f32 %v504, 0.0
    %v537 = vmax.f32 %v507, 0.0
    %v538 = vmax.f32 %v512, 0.0
    %v539 = vmax.f32 %v515, 0.0
    %v540 = vmax.f32 %v520, 0.0
    %v541 = vmax.f32 %v523, 0.0
    %v542 = vpack.c.bf16 %v527, %v526
    %v543 = vpack.c.bf16 %v529, %v528
    %v544 = vpack.c.bf16 %v531, %v530
    %v545 = vpack.c.bf16 %v533, %v532
    %v546 = vpack.c.bf16 %v535, %v534
    %v547 = vpack.c.bf16 %v537, %v536
    %v548 = vpack.c.bf16 %v539, %v538
    %v549 = vpack.c.bf16 %v541, %v540
    %550 = vmatprep.subr.bf16.mxu0 0
    %551 = vmatpush1.bf16.msra.mxu0 %v542
    %552 = vmatprep.subr.bf16.mxu0 0
    %553 = vmatpush1.bf16.msra.mxu0 %v543
    %554 = vmatprep.subr.bf16.mxu0 0
    %555 = vmatpush1.bf16.msra.mxu0 %v544
    %556 = vmatprep.subr.bf16.mxu0 0
    %557 = vmatpush1.bf16.msra.mxu0 %v545
    %558 = vmatprep.subr.bf16.mxu0 0
    %559 = vmatpush1.bf16.msra.mxu0 %v546
    %560 = vmatprep.subr.bf16.mxu0 0
    %561 = vmatpush1.bf16.msra.mxu0 %v547
    %562 = vmatprep.subr.bf16.mxu0 0
    %563 = vmatpush1.bf16.msra.mxu0 %v548
    %564 = vmatprep.subr.bf16.mxu0 0
    %565 = vmatpush1.bf16.msra.mxu0 %v549
    %566 = vmatprep.subr.bf16.mxu0 0
    %567 = vmatpush1.bf16.msra.mxu0 0
    %568 = vmatprep.subr.bf16.mxu0 0
    %569 = vmatpush1.bf16.msra.mxu0 0
    %570 = vmatprep.subr.bf16.mxu0 0
    %571 = vmatpush1.bf16.msra.mxu0 0
    %572 = vmatprep.subr.bf16.mxu0 0
    %573 = vmatpush1.bf16.msra.mxu0 0
    %574 = vmatprep.subr.bf16.mxu0 0
    %575 = vmatpush1.bf16.msra.mxu0 0
    %576 = vmatprep.subr.bf16.mxu0 0
    %577 = vmatpush1.bf16.msra.mxu0 0
    %578 = vmatprep.subr.bf16.mxu0 0
    %579 = vmatpush1.bf16.msra.mxu0 0
    %580 = vmatprep.subr.bf16.mxu0 0
    %581 = vmatpush1.bf16.msra.mxu0 0
    %582 = vmatprep.mubr.bf16.mxu0 0
    %583 = vmatmul.mubr.bf16.gmra.mrb[0].mxu0 %v127
    %v584 = vpop.f32.mrb[0].mxu0
    %v585 = vadd.f32 0.0, %v584
    %v586 = vpop.f32.mrb[0].mxu0
    %v587 = vpop.f32.mrb[0].mxu0
    %v588 = vadd.f32 0.0, %v587
    %v589 = vpop.f32.mrb[0].mxu0
    %590 = vmatprep.mubr.bf16.mxu0 0
    %591 = vmatmul.mubr.bf16.gmra.mrb[0].mxu0 %v128
    %v592 = vpop.f32.mrb[0].mxu0
    %v593 = vadd.f32 0.0, %v592
    %v594 = vpop.f32.mrb[0].mxu0
    %v595 = vpop.f32.mrb[0].mxu0
    %v596 = vadd.f32 0.0, %v595
    %v597 = vpop.f32.mrb[0].mxu0
    %598 = vmatprep.mubr.bf16.mxu0 0
    %599 = vmatmul.mubr.bf16.gmra.mrb[0].mxu0 %v129
    %v600 = vpop.f32.mrb[0].mxu0
    %v601 = vadd.f32 0.0, %v600
    %v602 = vpop.f32.mrb[0].mxu0
    %v603 = vpop.f32.mrb[0].mxu0
    %v604 = vadd.f32 0.0, %v603
    %v605 = vpop.f32.mrb[0].mxu0
    %606 = vmatprep.mubr.bf16.mxu0 0
    %607 = vmatmul.mubr.bf16.gmra.mrb[0].mxu0 %v130
    %v608 = vpop.f32.mrb[0].mxu0
    %v609 = vadd.f32 0.0, %v608
    %v610 = vpop.f32.mrb[0].mxu0
    %v611 = vpop.f32.mrb[0].mxu0
    %v612 = vadd.f32 0.0, %v611
    %v613 = vpop.f32.mrb[0].mxu0
    %614 = vmatprep.mubr.bf16.mxu0 0
    %615 = vmatmul.mubr.bf16.gmra.mrb[0].mxu0 %v131
    %v616 = vpop.f32.mrb[0].mxu0
    %v617 = vadd.f32 0.0, %v616
    %v618 = vpop.f32.mrb[0].mxu0
    %v619 = vpop.f32.mrb[0].mxu0
    %v620 = vadd.f32 0.0, %v619
    %v621 = vpop.f32.mrb[0].mxu0
    %622 = vmatprep.mubr.bf16.mxu0 0
    %623 = vmatmul.mubr.bf16.gmra.mrb[0].mxu0 %v132
    %v624 = vpop.f32.mrb[0].mxu0
    %v625 = vadd.f32 0.0, %v624
    %v626 = vpop.f32.mrb[0].mxu0
    %v627 = vpop.f32.mrb[0].mxu0
    %v628 = vadd.f32 0.0, %v627
    %v629 = vpop.f32.mrb[0].mxu0
    %630 = vmatprep.mubr.bf16.mxu0 0
    %631 = vmatmul.mubr.bf16.gmra.mrb[0].mxu0 %v133
    %v632 = vpop.f32.mrb[0].mxu0
    %v633 = vadd.f32 0.0, %v632
    %v634 = vpop.f32.mrb[0].mxu0
    %v635 = vpop.f32.mrb[0].mxu0
    %v636 = vadd.f32 0.0, %v635
    %v637 = vpop.f32.mrb[0].mxu0
    %638 = vmatprep.mubr.bf16.mxu0 0
    %639 = vmatmul.mubr.bf16.gmra.mrb[0].mxu0 %v134
    %v640 = vpop.f32.mrb[0].mxu0
    %v641 = vadd.f32 0.0, %v640
    %v642 = vpop.f32.mrb[0].mxu0
    %v643 = vpop.f32.mrb[0].mxu0
    %v644 = vadd.f32 0.0, %v643
    %v645 = vpop.f32.mrb[0].mxu0
    %646 = vdwg.mxu0
    %v647 = vpack.c.bf16 %v588, %v585
    %v648 = vpack.c.bf16 %v596, %v593
    %v649 = vpack.c.bf16 %v604, %v601
    %v650 = vpack.c.bf16 %v612, %v609
    %v651 = vpack.c.bf16 %v620, %v617
    %v652 = vpack.c.bf16 %v628, %v625
    %v653 = vpack.c.bf16 %v636, %v633
    %v654 = vpack.c.bf16 %v644, %v641
    %v655 = vld [vmem:[#allocation7 + $0x80] sm:$0xf]
    %v656 = vld [vmem:[#allocation7 + $0x84] sm:$0xf]
    %v657 = vld [vmem:[#allocation7 + $0x88] sm:$0xf]
    %v658 = vld [vmem:[#allocation7 + $0x8c] sm:$0xf]
    %v659 = vld [vmem:[#allocation7 + $0x90] sm:$0xf]
    %v660 = vld [vmem:[#allocation7 + $0x94] sm:$0xf]
    %v661 = vld [vmem:[#allocation7 + $0x98] sm:$0xf]
    %v662 = vld [vmem:[#allocation7 + $0x9c] sm:$0xf]
    %v663 = vld [vmem:[#allocation7 + $0xa0] sm:$0xf]
    %v664 = vld [vmem:[#allocation7 + $0xa4] sm:$0xf]
    %v665 = vld [vmem:[#allocation7 + $0xa8] sm:$0xf]
    %v666 = vld [vmem:[#allocation7 + $0xac] sm:$0xf]
    %v667 = vld [vmem:[#allocation7 + $0xb0] sm:$0xf]
    %v668 = vld [vmem:[#allocation7 + $0xb4] sm:$0xf]
    %v669 = vld [vmem:[#allocation7 + $0xb8] sm:$0xf]
    %v670 = vld [vmem:[#allocation7 + $0xbc] sm:$0xf]
    %v671 = vld [vmem:[#allocation7 + $0xc0] sm:$0xf]
    %v672 = vld [vmem:[#allocation7 + $0xc4] sm:$0xf]
    %v673 = vld [vmem:[#allocation7 + $0xc8] sm:$0xf]
    %v674 = vld [vmem:[#allocation7 + $0xcc] sm:$0xf]
    %v675 = vld [vmem:[#allocation7 + $0xd0] sm:$0xf]
    %v676 = vld [vmem:[#allocation7 + $0xd4] sm:$0xf]
    %v677 = vld [vmem:[#allocation7 + $0xd8] sm:$0xf]
    %v678 = vld [vmem:[#allocation7 + $0xdc] sm:$0xf]
    %v679 = vld [vmem:[#allocation7 + $0xe0] sm:$0xf]
    %v680 = vld [vmem:[#allocation7 + $0xe4] sm:$0xf]
    %v681 = vld [vmem:[#allocation7 + $0xe8] sm:$0xf]
    %v682 = vld [vmem:[#allocation7 + $0xec] sm:$0xf]
    %v683 = vld [vmem:[#allocation7 + $0xf0] sm:$0xf]
    %v684 = vld [vmem:[#allocation7 + $0xf4] sm:$0xf]
    %v685 = vld [vmem:[#allocation7 + $0xf8] sm:$0xf]
    %v686 = vld [vmem:[#allocation7 + $0xfc] sm:$0xf]
    %v687 = vld [vmem:[%s4 + $0x1] sm:$0x1]
    %v688 = vlaneseq
    %v689 = vshrl.u32 %v688, 7
    %v690 = vsub.s32 0, %v689
    %v691 = vrot.slane %v687, %v690
    %v724 = vunpack.c.l.b16 %v655
    %v725 = vunpack.c.l.b16 %v656
    %v726 = vunpack.c.l.b16 %v657
    %v727 = vunpack.c.l.b16 %v658
    %v728 = vunpack.c.l.b16 %v659
    %v729 = vunpack.c.l.b16 %v660
    %v730 = vunpack.c.l.b16 %v661
    %v731 = vunpack.c.l.b16 %v662
    %v732 = vunpack.c.l.b16 %v663
    %v733 = vunpack.c.l.b16 %v664
    %v734 = vunpack.c.l.b16 %v665
    %v735 = vunpack.c.l.b16 %v666
    %v736 = vunpack.c.l.b16 %v667
    %v737 = vunpack.c.l.b16 %v668
    %v738 = vunpack.c.l.b16 %v669
    %v739 = vunpack.c.l.b16 %v670
    %v740 = vunpack.c.l.b16 %v671
    %v741 = vunpack.c.l.b16 %v672
    %v742 = vunpack.c.l.b16 %v673
    %v743 = vunpack.c.l.b16 %v674
    %v744 = vunpack.c.l.b16 %v675
    %v745 = vunpack.c.l.b16 %v676
    %v746 = vunpack.c.l.b16 %v677
    %v747 = vunpack.c.l.b16 %v678
    %v748 = vunpack.c.l.b16 %v679
    %v749 = vunpack.c.l.b16 %v680
    %v750 = vunpack.c.l.b16 %v681
    %v751 = vunpack.c.l.b16 %v682
    %v752 = vunpack.c.l.b16 %v683
    %v753 = vunpack.c.l.b16 %v684
    %v754 = vunpack.c.l.b16 %v685
    %v755 = vunpack.c.l.b16 %v686
    %v756 = vpack.c.b16 %v725, %v724
    %v757 = vpack.c.b16 %v727, %v726
    %v758 = vpack.c.b16 %v729, %v728
    %v759 = vpack.c.b16 %v731, %v730
    %v760 = vpack.c.b16 %v733, %v732
    %v761 = vpack.c.b16 %v735, %v734
    %v762 = vpack.c.b16 %v737, %v736
    %v763 = vpack.c.b16 %v739, %v738
    %v764 = vpack.c.b16 %v741, %v740
    %v765 = vpack.c.b16 %v743, %v742
    %v766 = vpack.c.b16 %v745, %v744
    %v767 = vpack.c.b16 %v747, %v746
    %v768 = vpack.c.b16 %v749, %v748
    %v769 = vpack.c.b16 %v751, %v750
    %v770 = vpack.c.b16 %v753, %v752
    %v771 = vpack.c.b16 %v755, %v754
    %788 = vmatprep.subr.bf16.mxu0 0
    %789 = vmatpush1.bf16.msra.mxu0 %v756
    %790 = vmatprep.subr.bf16.mxu0 0
    %791 = vmatpush1.bf16.msra.mxu0 %v757
    %792 = vmatprep.subr.bf16.mxu0 0
    %793 = vmatpush1.bf16.msra.mxu0 %v758
    %794 = vmatprep.subr.bf16.mxu0 0
    %795 = vmatpush1.bf16.msra.mxu0 %v759
    %796 = vmatprep.subr.bf16.mxu0 0
    %797 = vmatpush1.bf16.msra.mxu0 %v760
    %798 = vmatprep.subr.bf16.mxu0 0
    %799 = vmatpush1.bf16.msra.mxu0 %v761
    %800 = vmatprep.subr.bf16.mxu0 0
    %801 = vmatpush1.bf16.msra.mxu0 %v762
    %802 = vmatprep.subr.bf16.mxu0 0
    %803 = vmatpush1.bf16.msra.mxu0 %v763
    %804 = vmatprep.subr.bf16.mxu0 0
    %805 = vmatpush1.bf16.msra.mxu0 %v764
    %806 = vmatprep.subr.bf16.mxu0 0
    %807 = vmatpush1.bf16.msra.mxu0 %v765
    %808 = vmatprep.subr.bf16.mxu0 0
    %809 = vmatpush1.bf16.msra.mxu0 %v766
    %810 = vmatprep.subr.bf16.mxu0 0
    %811 = vmatpush1.bf16.msra.mxu0 %v767
    %812 = vmatprep.subr.bf16.mxu0 0
    %813 = vmatpush1.bf16.msra.mxu0 %v768
    %814 = vmatprep.subr.bf16.mxu0 0
    %815 = vmatpush1.bf16.msra.mxu0 %v769
    %816 = vmatprep.subr.bf16.mxu0 0
    %817 = vmatpush1.bf16.msra.mxu0 %v770
    %818 = vmatprep.subr.bf16.mxu0 0
    %819 = vmatpush1.bf16.msra.mxu0 %v771
    %820 = vmatprep.mubr.bf16.mxu0 %v542
    %821 = vmatmul.mubr.bf16.gmra.mrb[0].mxu0 %v647
    %v822 = vpop.f32.mrb[0].mxu0
    %v823 = vadd.f32 %v691, %v822
    %v824 = vpop.f32.mrb[0].mxu0
    %v825 = vpop.f32.mrb[0].mxu0
    %v826 = vadd.f32 %v691, %v825
    %v827 = vpop.f32.mrb[0].mxu0
    %828 = vmatprep.mubr.bf16.mxu0 %v543
    %829 = vmatmul.mubr.bf16.gmra.mrb[0].mxu0 %v648
    %v830 = vpop.f32.mrb[0].mxu0
    %v831 = vadd.f32 %v691, %v830
    %v832 = vpop.f32.mrb[0].mxu0
    %v833 = vpop.f32.mrb[0].mxu0
    %v834 = vadd.f32 %v691, %v833
    %v835 = vpop.f32.mrb[0].mxu0
    %836 = vmatprep.mubr.bf16.mxu0 %v544
    %837 = vmatmul.mubr.bf16.gmra.mrb[0].mxu0 %v649
    %v838 = vpop.f32.mrb[0].mxu0
    %v839 = vadd.f32 %v691, %v838
    %v840 = vpop.f32.mrb[0].mxu0
    %v841 = vpop.f32.mrb[0].mxu0
    %v842 = vadd.f32 %v691, %v841
    %v843 = vpop.f32.mrb[0].mxu0
    %844 = vmatprep.mubr.bf16.mxu0 %v545
    %845 = vmatmul.mubr.bf16.gmra.mrb[0].mxu0 %v650
    %v846 = vpop.f32.mrb[0].mxu0
    %v847 = vadd.f32 %v691, %v846
    %v848 = vpop.f32.mrb[0].mxu0
    %v849 = vpop.f32.mrb[0].mxu0
    %v850 = vadd.f32 %v691, %v849
    %v851 = vpop.f32.mrb[0].mxu0
    %852 = vmatprep.mubr.bf16.mxu0 %v546
    %853 = vmatmul.mubr.bf16.gmra.mrb[0].mxu0 %v651
    %v854 = vpop.f32.mrb[0].mxu0
    %v855 = vadd.f32 %v691, %v854
    %v856 = vpop.f32.mrb[0].mxu0
    %v857 = vpop.f32.mrb[0].mxu0
    %v858 = vadd.f32 %v691, %v857
    %v859 = vpop.f32.mrb[0].mxu0
    %860 = vmatprep.mubr.bf16.mxu0 %v547
    %861 = vmatmul.mubr.bf16.gmra.mrb[0].mxu0 %v652
    %v862 = vpop.f32.mrb[0].mxu0
    %v863 = vadd.f32 %v691, %v862
    %v864 = vpop.f32.mrb[0].mxu0
    %v865 = vpop.f32.mrb[0].mxu0
    %v866 = vadd.f32 %v691, %v865
    %v867 = vpop.f32.mrb[0].mxu0
    %868 = vmatprep.mubr.bf16.mxu0 %v548
    %869 = vmatmul.mubr.bf16.gmra.mrb[0].mxu0 %v653
    %v870 = vpop.f32.mrb[0].mxu0
    %v871 = vadd.f32 %v691, %v870
    %v872 = vpop.f32.mrb[0].mxu0
    %v873 = vpop.f32.mrb[0].mxu0
    %v874 = vadd.f32 %v691, %v873
    %v875 = vpop.f32.mrb[0].mxu0
    %876 = vmatprep.mubr.bf16.mxu0 %v549
    %877 = vmatmul.mubr.bf16.gmra.mrb[0].mxu0 %v654
    %v878 = vpop.f32.mrb[0].mxu0
    %v879 = vadd.f32 %v691, %v878
    %v880 = vpop.f32.mrb[0].mxu0
    %v881 = vpop.f32.mrb[0].mxu0
    %v882 = vadd.f32 %v691, %v881
    %v883 = vpop.f32.mrb[0].mxu0
    %884 = vdwg.mxu0
    %v885 = vmax.f32 %v823, 0.0
    %v886 = vmax.f32 %v826, 0.0
    %v887 = vmax.f32 %v831, 0.0
    %v888 = vmax.f32 %v834, 0.0
    %v889 = vmax.f32 %v839, 0.0
    %v890 = vmax.f32 %v842, 0.0
    %v891 = vmax.f32 %v847, 0.0
    %v892 = vmax.f32 %v850, 0.0
    %v893 = vmax.f32 %v855, 0.0
    %v894 = vmax.f32 %v858, 0.0
    %v895 = vmax.f32 %v863, 0.0
    %v896 = vmax.f32 %v866, 0.0
    %v897 = vmax.f32 %v871, 0.0
    %v898 = vmax.f32 %v874, 0.0
    %v899 = vmax.f32 %v879, 0.0
    %v900 = vmax.f32 %v882, 0.0
    %v901 = vpack.c.bf16 %v886, %v885
    %v902 = vpack.c.bf16 %v888, %v887
    %v903 = vpack.c.bf16 %v890, %v889
    %v904 = vpack.c.bf16 %v892, %v891
    %v905 = vpack.c.bf16 %v894, %v893
    %v906 = vpack.c.bf16 %v896, %v895
    %v907 = vpack.c.bf16 %v898, %v897
    %v908 = vpack.c.bf16 %v900, %v899
    %909 = vmatprep.subr.bf16.mxu0 0
    %910 = vmatpush1.bf16.msra.mxu0 %v901
    %911 = vmatprep.subr.bf16.mxu0 0
    %912 = vmatpush1.bf16.msra.mxu0 %v902
    %913 = vmatprep.subr.bf16.mxu0 0
    %914 = vmatpush1.bf16.msra.mxu0 %v903
    %915 = vmatprep.subr.bf16.mxu0 0
    %916 = vmatpush1.bf16.msra.mxu0 %v904
    %917 = vmatprep.subr.bf16.mxu0 0
    %918 = vmatpush1.bf16.msra.mxu0 %v905
    %919 = vmatprep.subr.bf16.mxu0 0
    %920 = vmatpush1.bf16.msra.mxu0 %v906
    %921 = vmatprep.subr.bf16.mxu0 0
    %922 = vmatpush1.bf16.msra.mxu0 %v907
    %923 = vmatprep.subr.bf16.mxu0 0
    %924 = vmatpush1.bf16.msra.mxu0 %v908
    %925 = vmatprep.subr.bf16.mxu0 0
    %926 = vmatpush1.bf16.msra.mxu0 0
    %927 = vmatprep.subr.bf16.mxu0 0
    %928 = vmatpush1.bf16.msra.mxu0 0
    %929 = vmatprep.subr.bf16.mxu0 0
    %930 = vmatpush1.bf16.msra.mxu0 0
    %931 = vmatprep.subr.bf16.mxu0 0
    %932 = vmatpush1.bf16.msra.mxu0 0
    %933 = vmatprep.subr.bf16.mxu0 0
    %934 = vmatpush1.bf16.msra.mxu0 0
    %935 = vmatprep.subr.bf16.mxu0 0
    %936 = vmatpush1.bf16.msra.mxu0 0
    %937 = vmatprep.subr.bf16.mxu0 0
    %938 = vmatpush1.bf16.msra.mxu0 0
    %939 = vmatprep.subr.bf16.mxu0 0
    %940 = vmatpush1.bf16.msra.mxu0 0
    %941 = vmatprep.mubr.bf16.mxu0 0
    %942 = vmatmul.mubr.bf16.gmra.mrb[0].mxu0 %v127
    %v943 = vpop.f32.mrb[0].mxu0
    %v944 = vadd.f32 0.0, %v943
    %v945 = vpop.f32.mrb[0].mxu0
    %v946 = vpop.f32.mrb[0].mxu0
    %v947 = vadd.f32 0.0, %v946
    %v948 = vpop.f32.mrb[0].mxu0
    %949 = vmatprep.mubr.bf16.mxu0 0
    %950 = vmatmul.mubr.bf16.gmra.mrb[0].mxu0 %v128
    %v951 = vpop.f32.mrb[0].mxu0
    %v952 = vadd.f32 0.0, %v951
    %v953 = vpop.f32.mrb[0].mxu0
    %v954 = vpop.f32.mrb[0].mxu0
    %v955 = vadd.f32 0.0, %v954
    %v956 = vpop.f32.mrb[0].mxu0
    %957 = vmatprep.mubr.bf16.mxu0 0
    %958 = vmatmul.mubr.bf16.gmra.mrb[0].mxu0 %v129
    %v959 = vpop.f32.mrb[0].mxu0
    %v960 = vadd.f32 0.0, %v959
    %v961 = vpop.f32.mrb[0].mxu0
    %v962 = vpop.f32.mrb[0].mxu0
    %v963 = vadd.f32 0.0, %v962
    %v964 = vpop.f32.mrb[0].mxu0
    %965 = vmatprep.mubr.bf16.mxu0 0
    %966 = vmatmul.mubr.bf16.gmra.mrb[0].mxu0 %v130
    %v967 = vpop.f32.mrb[0].mxu0
    %v968 = vadd.f32 0.0, %v967
    %v969 = vpop.f32.mrb[0].mxu0
    %v970 = vpop.f32.mrb[0].mxu0
    %v971 = vadd.f32 0.0, %v970
    %v972 = vpop.f32.mrb[0].mxu0
    %973 = vmatprep.mubr.bf16.mxu0 0
    %974 = vmatmul.mubr.bf16.gmra.mrb[0].mxu0 %v131
    %v975 = vpop.f32.mrb[0].mxu0
    %v976 = vadd.f32 0.0, %v975
    %v977 = vpop.f32.mrb[0].mxu0
    %v978 = vpop.f32.mrb[0].mxu0
    %v979 = vadd.f32 0.0, %v978
    %v980 = vpop.f32.mrb[0].mxu0
    %981 = vmatprep.mubr.bf16.mxu0 0
    %982 = vmatmul.mubr.bf16.gmra.mrb[0].mxu0 %v132
    %v983 = vpop.f32.mrb[0].mxu0
    %v984 = vadd.f32 0.0, %v983
    %v985 = vpop.f32.mrb[0].mxu0
    %v986 = vpop.f32.mrb[0].mxu0
    %v987 = vadd.f32 0.0, %v986
    %v988 = vpop.f32.mrb[0].mxu0
    %989 = vmatprep.mubr.bf16.mxu0 0
    %990 = vmatmul.mubr.bf16.gmra.mrb[0].mxu0 %v133
    %v991 = vpop.f32.mrb[0].mxu0
    %v992 = vadd.f32 0.0, %v991
    %v993 = vpop.f32.mrb[0].mxu0
    %v994 = vpop.f32.mrb[0].mxu0
    %v995 = vadd.f32 0.0, %v994
    %v996 = vpop.f32.mrb[0].mxu0
    %997 = vmatprep.mubr.bf16.mxu0 0
    %998 = vmatmul.mubr.bf16.gmra.mrb[0].mxu0 %v134
    %v999 = vpop.f32.mrb[0].mxu0
    %v1000 = vadd.f32 0.0, %v999
    %v1001 = vpop.f32.mrb[0].mxu0
    %v1002 = vpop.f32.mrb[0].mxu0
    %v1003 = vadd.f32 0.0, %v1002
    %v1004 = vpop.f32.mrb[0].mxu0
    %1005 = vdwg.mxu0
    %v1006 = vpack.c.bf16 %v947, %v944
    %v1007 = vpack.c.bf16 %v955, %v952
    %v1008 = vpack.c.bf16 %v963, %v960
    %v1009 = vpack.c.bf16 %v971, %v968
    %v1010 = vpack.c.bf16 %v979, %v976
    %v1011 = vpack.c.bf16 %v987, %v984
    %v1012 = vpack.c.bf16 %v995, %v992
    %v1013 = vpack.c.bf16 %v1003, %v1000
    %v1014 = vld [vmem:[#allocation7 + $0x100] sm:$0xf]
    %v1015 = vld [vmem:[#allocation7 + $0x104] sm:$0xf]
    %v1016 = vld [vmem:[#allocation7 + $0x108] sm:$0xf]
    %v1017 = vld [vmem:[#allocation7 + $0x10c] sm:$0xf]
    %v1018 = vld [vmem:[#allocation7 + $0x110] sm:$0xf]
    %v1019 = vld [vmem:[#allocation7 + $0x114] sm:$0xf]
    %v1020 = vld [vmem:[#allocation7 + $0x118] sm:$0xf]
    %v1021 = vld [vmem:[#allocation7 + $0x11c] sm:$0xf]
    %v1022 = vld [vmem:[#allocation7 + $0x120] sm:$0xf]
    %v1023 = vld [vmem:[#allocation7 + $0x124] sm:$0xf]
    %v1024 = vld [vmem:[#allocation7 + $0x128] sm:$0xf]
    %v1025 = vld [vmem:[#allocation7 + $0x12c] sm:$0xf]
    %v1026 = vld [vmem:[#allocation7 + $0x130] sm:$0xf]
    %v1027 = vld [vmem:[#allocation7 + $0x134] sm:$0xf]
    %v1028 = vld [vmem:[#allocation7 + $0x138] sm:$0xf]
    %v1029 = vld [vmem:[#allocation7 + $0x13c] sm:$0xf]
    %v1030 = vld [vmem:[#allocation7 + $0x140] sm:$0xf]
    %v1031 = vld [vmem:[#allocation7 + $0x144] sm:$0xf]
    %v1032 = vld [vmem:[#allocation7 + $0x148] sm:$0xf]
    %v1033 = vld [vmem:[#allocation7 + $0x14c] sm:$0xf]
    %v1034 = vld [vmem:[#allocation7 + $0x150] sm:$0xf]
    %v1035 = vld [vmem:[#allocation7 + $0x154] sm:$0xf]
    %v1036 = vld [vmem:[#allocation7 + $0x158] sm:$0xf]
    %v1037 = vld [vmem:[#allocation7 + $0x15c] sm:$0xf]
    %v1038 = vld [vmem:[#allocation7 + $0x160] sm:$0xf]
    %v1039 = vld [vmem:[#allocation7 + $0x164] sm:$0xf]
    %v1040 = vld [vmem:[#allocation7 + $0x168] sm:$0xf]
    %v1041 = vld [vmem:[#allocation7 + $0x16c] sm:$0xf]
    %v1042 = vld [vmem:[#allocation7 + $0x170] sm:$0xf]
    %v1043 = vld [vmem:[#allocation7 + $0x174] sm:$0xf]
    %v1044 = vld [vmem:[#allocation7 + $0x178] sm:$0xf]
    %v1045 = vld [vmem:[#allocation7 + $0x17c] sm:$0xf]
    %v1046 = vld [vmem:[%s4 + $0x2] sm:$0x1]
    %v1047 = vlaneseq
    %v1048 = vshrl.u32 %v1047, 7
    %v1049 = vsub.s32 0, %v1048
    %v1050 = vrot.slane %v1046, %v1049
    %v1083 = vunpack.c.l.b16 %v1014
    %v1084 = vunpack.c.l.b16 %v1015
    %v1085 = vunpack.c.l.b16 %v1016
    %v1086 = vunpack.c.l.b16 %v1017
    %v1087 = vunpack.c.l.b16 %v1018
    %v1088 = vunpack.c.l.b16 %v1019
    %v1089 = vunpack.c.l.b16 %v1020
    %v1090 = vunpack.c.l.b16 %v1021
    %v1091 = vunpack.c.l.b16 %v1022
    %v1092 = vunpack.c.l.b16 %v1023
    %v1093 = vunpack.c.l.b16 %v1024
    %v1094 = vunpack.c.l.b16 %v1025
    %v1095 = vunpack.c.l.b16 %v1026
    %v1096 = vunpack.c.l.b16 %v1027
    %v1097 = vunpack.c.l.b16 %v1028
    %v1098 = vunpack.c.l.b16 %v1029
    %v1099 = vunpack.c.l.b16 %v1030
    %v1100 = vunpack.c.l.b16 %v1031
    %v1101 = vunpack.c.l.b16 %v1032
    %v1102 = vunpack.c.l.b16 %v1033
    %v1103 = vunpack.c.l.b16 %v1034
    %v1104 = vunpack.c.l.b16 %v1035
    %v1105 = vunpack.c.l.b16 %v1036
    %v1106 = vunpack.c.l.b16 %v1037
    %v1107 = vunpack.c.l.b16 %v1038
    %v1108 = vunpack.c.l.b16 %v1039
    %v1109 = vunpack.c.l.b16 %v1040
    %v1110 = vunpack.c.l.b16 %v1041
    %v1111 = vunpack.c.l.b16 %v1042
    %v1112 = vunpack.c.l.b16 %v1043
    %v1113 = vunpack.c.l.b16 %v1044
    %v1114 = vunpack.c.l.b16 %v1045
    %v1115 = vpack.c.b16 %v1084, %v1083
    %v1116 = vpack.c.b16 %v1086, %v1085
    %v1117 = vpack.c.b16 %v1088, %v1087
    %v1118 = vpack.c.b16 %v1090, %v1089
    %v1119 = vpack.c.b16 %v1092, %v1091
    %v1120 = vpack.c.b16 %v1094, %v1093
    %v1121 = vpack.c.b16 %v1096, %v1095
    %v1122 = vpack.c.b16 %v1098, %v1097
    %v1123 = vpack.c.b16 %v1100, %v1099
    %v1124 = vpack.c.b16 %v1102, %v1101
    %v1125 = vpack.c.b16 %v1104, %v1103
    %v1126 = vpack.c.b16 %v1106, %v1105
    %v1127 = vpack.c.b16 %v1108, %v1107
    %v1128 = vpack.c.b16 %v1110, %v1109
    %v1129 = vpack.c.b16 %v1112, %v1111
    %v1130 = vpack.c.b16 %v1114, %v1113
    %1147 = vmatprep.subr.bf16.mxu0 0
    %1148 = vmatpush1.bf16.msra.mxu0 %v1115
    %1149 = vmatprep.subr.bf16.mxu0 0
    %1150 = vmatpush1.bf16.msra.mxu0 %v1116
    %1151 = vmatprep.subr.bf16.mxu0 0
    %1152 = vmatpush1.bf16.msra.mxu0 %v1117
    %1153 = vmatprep.subr.bf16.mxu0 0
    %1154 = vmatpush1.bf16.msra.mxu0 %v1118
    %1155 = vmatprep.subr.bf16.mxu0 0
    %1156 = vmatpush1.bf16.msra.mxu0 %v1119
    %1157 = vmatprep.subr.bf16.mxu0 0
    %1158 = vmatpush1.bf16.msra.mxu0 %v1120
    %1159 = vmatprep.subr.bf16.mxu0 0
    %1160 = vmatpush1.bf16.msra.mxu0 %v1121
    %1161 = vmatprep.subr.bf16.mxu0 0
    %1162 = vmatpush1.bf16.msra.mxu0 %v1122
    %1163 = vmatprep.subr.bf16.mxu0 0
    %1164 = vmatpush1.bf16.msra.mxu0 %v1123
    %1165 = vmatprep.subr.bf16.mxu0 0
    %1166 = vmatpush1.bf16.msra.mxu0 %v1124
    %1167 = vmatprep.subr.bf16.mxu0 0
    %1168 = vmatpush1.bf16.msra.mxu0 %v1125
    %1169 = vmatprep.subr.bf16.mxu0 0
    %1170 = vmatpush1.bf16.msra.mxu0 %v1126
    %1171 = vmatprep.subr.bf16.mxu0 0
    %1172 = vmatpush1.bf16.msra.mxu0 %v1127
    %1173 = vmatprep.subr.bf16.mxu0 0
    %1174 = vmatpush1.bf16.msra.mxu0 %v1128
    %1175 = vmatprep.subr.bf16.mxu0 0
    %1176 = vmatpush1.bf16.msra.mxu0 %v1129
    %1177 = vmatprep.subr.bf16.mxu0 0
    %1178 = vmatpush1.bf16.msra.mxu0 %v1130
    %1179 = vmatprep.mubr.bf16.mxu0 %v901
    %1180 = vmatmul.mubr.bf16.gmra.mrb[0].mxu0 %v1006
    %v1181 = vpop.f32.mrb[0].mxu0
    %v1182 = vadd.f32 %v1050, %v1181
    %v1183 = vpop.f32.mrb[0].mxu0
    %v1184 = vpop.f32.mrb[0].mxu0
    %v1185 = vadd.f32 %v1050, %v1184
    %v1186 = vpop.f32.mrb[0].mxu0
    %1187 = vmatprep.mubr.bf16.mxu0 %v902
    %1188 = vmatmul.mubr.bf16.gmra.mrb[0].mxu0 %v1007
    %v1189 = vpop.f32.mrb[0].mxu0
    %v1190 = vadd.f32 %v1050, %v1189
    %v1191 = vpop.f32.mrb[0].mxu0
    %v1192 = vpop.f32.mrb[0].mxu0
    %v1193 = vadd.f32 %v1050, %v1192
    %v1194 = vpop.f32.mrb[0].mxu0
    %1195 = vmatprep.mubr.bf16.mxu0 %v903
    %1196 = vmatmul.mubr.bf16.gmra.mrb[0].mxu0 %v1008
    %v1197 = vpop.f32.mrb[0].mxu0
    %v1198 = vadd.f32 %v1050, %v1197
    %v1199 = vpop.f32.mrb[0].mxu0
    %v1200 = vpop.f32.mrb[0].mxu0
    %v1201 = vadd.f32 %v1050, %v1200
    %v1202 = vpop.f32.mrb[0].mxu0
    %1203 = vmatprep.mubr.bf16.mxu0 %v904
    %1204 = vmatmul.mubr.bf16.gmra.mrb[0].mxu0 %v1009
    %v1205 = vpop.f32.mrb[0].mxu0
    %v1206 = vadd.f32 %v1050, %v1205
    %v1207 = vpop.f32.mrb[0].mxu0
    %v1208 = vpop.f32.mrb[0].mxu0
    %v1209 = vadd.f32 %v1050, %v1208
    %v1210 = vpop.f32.mrb[0].mxu0
    %1211 = vmatprep.mubr.bf16.mxu0 %v905
    %1212 = vmatmul.mubr.bf16.gmra.mrb[0].mxu0 %v1010
    %v1213 = vpop.f32.mrb[0].mxu0
    %v1214 = vadd.f32 %v1050, %v1213
    %v1215 = vpop.f32.mrb[0].mxu0
    %v1216 = vpop.f32.mrb[0].mxu0
    %v1217 = vadd.f32 %v1050, %v1216
    %v1218 = vpop.f32.mrb[0].mxu0
    %1219 = vmatprep.mubr.bf16.mxu0 %v906
    %1220 = vmatmul.mubr.bf16.gmra.mrb[0].mxu0 %v1011
    %v1221 = vpop.f32.mrb[0].mxu0
    %v1222 = vadd.f32 %v1050, %v1221
    %v1223 = vpop.f32.mrb[0].mxu0
    %v1224 = vpop.f32.mrb[0].mxu0
    %v1225 = vadd.f32 %v1050, %v1224
    %v1226 = vpop.f32.mrb[0].mxu0
    %1227 = vmatprep.mubr.bf16.mxu0 %v907
    %1228 = vmatmul.mubr.bf16.gmra.mrb[0].mxu0 %v1012
    %v1229 = vpop.f32.mrb[0].mxu0
    %v1230 = vadd.f32 %v1050, %v1229
    %v1231 = vpop.f32.mrb[0].mxu0
    %v1232 = vpop.f32.mrb[0].mxu0
    %v1233 = vadd.f32 %v1050, %v1232
    %v1234 = vpop.f32.mrb[0].mxu0
    %1235 = vmatprep.mubr.bf16.mxu0 %v908
    %1236 = vmatmul.mubr.bf16.gmra.mrb[0].mxu0 %v1013
    %v1237 = vpop.f32.mrb[0].mxu0
    %v1238 = vadd.f32 %v1050, %v1237
    %v1239 = vpop.f32.mrb[0].mxu0
    %v1240 = vpop.f32.mrb[0].mxu0
    %v1241 = vadd.f32 %v1050, %v1240
    %v1242 = vpop.f32.mrb[0].mxu0
    %1243 = vdwg.mxu0
    %v1244 = vmax.f32 %v1182, 0.0
    %v1245 = vmax.f32 %v1185, 0.0
    %v1246 = vmax.f32 %v1190, 0.0
    %v1247 = vmax.f32 %v1193, 0.0
    %v1248 = vmax.f32 %v1198, 0.0
    %v1249 = vmax.f32 %v1201, 0.0
    %v1250 = vmax.f32 %v1206, 0.0
    %v1251 = vmax.f32 %v1209, 0.0
    %v1252 = vmax.f32 %v1214, 0.0
    %v1253 = vmax.f32 %v1217, 0.0
    %v1254 = vmax.f32 %v1222, 0.0
    %v1255 = vmax.f32 %v1225, 0.0
    %v1256 = vmax.f32 %v1230, 0.0
    %v1257 = vmax.f32 %v1233, 0.0
    %v1258 = vmax.f32 %v1238, 0.0
    %v1259 = vmax.f32 %v1241, 0.0
    %v1260 = vpack.c.bf16 %v1245, %v1244
    %v1261 = vpack.c.bf16 %v1247, %v1246
    %v1262 = vpack.c.bf16 %v1249, %v1248
    %v1263 = vpack.c.bf16 %v1251, %v1250
    %v1264 = vpack.c.bf16 %v1253, %v1252
    %v1265 = vpack.c.bf16 %v1255, %v1254
    %v1266 = vpack.c.bf16 %v1257, %v1256
    %v1267 = vpack.c.bf16 %v1259, %v1258
    %v1268 = vld [vmem:[%s2] sm:$0xf]
    %1269 = vmatprep.subr.bf16.mxu0 0
    %1270 = vmatpush1.bf16.msra.mxu0 %v1260
    %1271 = vmatprep.subr.bf16.mxu0 0
    %1272 = vmatpush1.bf16.msra.mxu0 %v1261
    %1273 = vmatprep.subr.bf16.mxu0 0
    %1274 = vmatpush1.bf16.msra.mxu0 %v1262
    %1275 = vmatprep.subr.bf16.mxu0 0
    %1276 = vmatpush1.bf16.msra.mxu0 %v1263
    %1277 = vmatprep.subr.bf16.mxu0 0
    %1278 = vmatpush1.bf16.msra.mxu0 %v1264
    %1279 = vmatprep.subr.bf16.mxu0 0
    %1280 = vmatpush1.bf16.msra.mxu0 %v1265
    %1281 = vmatprep.subr.bf16.mxu0 0
    %1282 = vmatpush1.bf16.msra.mxu0 %v1266
    %1283 = vmatprep.subr.bf16.mxu0 0
    %1284 = vmatpush1.bf16.msra.mxu0 %v1267
    %1285 = vmatprep.subr.bf16.mxu0 0
    %1286 = vmatpush1.bf16.msra.mxu0 0
    %1287 = vmatprep.subr.bf16.mxu0 0
    %1288 = vmatpush1.bf16.msra.mxu0 0
    %1289 = vmatprep.subr.bf16.mxu0 0
    %1290 = vmatpush1.bf16.msra.mxu0 0
    %1291 = vmatprep.subr.bf16.mxu0 0
    %1292 = vmatpush1.bf16.msra.mxu0 0
    %1293 = vmatprep.subr.bf16.mxu0 0
    %1294 = vmatpush1.bf16.msra.mxu0 0
    %1295 = vmatprep.subr.bf16.mxu0 0
    %1296 = vmatpush1.bf16.msra.mxu0 0
    %1297 = vmatprep.subr.bf16.mxu0 0
    %1298 = vmatpush1.bf16.msra.mxu0 0
    %1299 = vmatprep.subr.bf16.mxu0 0
    %1300 = vmatpush1.bf16.msra.mxu0 0
    %1301 = vmatprep.mubr.bf16.mxu0 0
    %1302 = vmatmul.mubr.bf16.gmra.mrb[0].mxu0 %v1268
    %v1303 = vpop.f32.mrb[0].mxu0
    %v1304 = vadd.f32 0.0, %v1303
    %v1305 = vpop.f32.mrb[0].mxu0
    %v1306 = vpop.f32.mrb[0].mxu0
    %v1307 = vpop.f32.mrb[0].mxu0
    %1308 = vdwg.mxu0
    %v1309 = vpack.c.bf16 %v1304, %v1304
    %v1310 = vld [vmem:[#allocation7 + $0x180] sm:$0xf]
    %v1311 = vld [vmem:[#allocation7 + $0x184] sm:$0xf]
    %v1312 = vld [vmem:[#allocation7 + $0x188] sm:$0xf]
    %v1313 = vld [vmem:[#allocation7 + $0x18c] sm:$0xf]
    %v1314 = vld [vmem:[#allocation7 + $0x190] sm:$0xf]
    %v1315 = vld [vmem:[#allocation7 + $0x194] sm:$0xf]
    %v1316 = vld [vmem:[#allocation7 + $0x198] sm:$0xf]
    %v1317 = vld [vmem:[#allocation7 + $0x19c] sm:$0xf]
    %v1318 = vld [vmem:[#allocation7 + $0x1a0] sm:$0xf]
    %v1319 = vld [vmem:[#allocation7 + $0x1a4] sm:$0xf]
    %v1320 = vld [vmem:[#allocation7 + $0x1a8] sm:$0xf]
    %v1321 = vld [vmem:[#allocation7 + $0x1ac] sm:$0xf]
    %v1322 = vld [vmem:[#allocation7 + $0x1b0] sm:$0xf]
    %v1323 = vld [vmem:[#allocation7 + $0x1b4] sm:$0xf]
    %v1324 = vld [vmem:[#allocation7 + $0x1b8] sm:$0xf]
    %v1325 = vld [vmem:[#allocation7 + $0x1bc] sm:$0xf]
    %v1326 = vld [vmem:[%s4 + $0x3] sm:$0x1]
    %v1327 = vlaneseq
    %v1328 = vshrl.u32 %v1327, 7
    %v1329 = vsub.s32 0, %v1328
    %v1330 = vrot.slane %v1326, %v1329
    %v1347 = vunpack.c.l.b16 %v1310
    %v1348 = vunpack.c.l.b16 %v1311
    %v1349 = vunpack.c.l.b16 %v1312
    %v1350 = vunpack.c.l.b16 %v1313
    %v1351 = vunpack.c.l.b16 %v1314
    %v1352 = vunpack.c.l.b16 %v1315
    %v1353 = vunpack.c.l.b16 %v1316
    %v1354 = vunpack.c.l.b16 %v1317
    %v1355 = vunpack.c.l.b16 %v1318
    %v1356 = vunpack.c.l.b16 %v1319
    %v1357 = vunpack.c.l.b16 %v1320
    %v1358 = vunpack.c.l.b16 %v1321
    %v1359 = vunpack.c.l.b16 %v1322
    %v1360 = vunpack.c.l.b16 %v1323
    %v1361 = vunpack.c.l.b16 %v1324
    %v1362 = vunpack.c.l.b16 %v1325
    %v1363 = vpack.c.b16 %v1348, %v1347
    %v1364 = vpack.c.b16 %v1350, %v1349
    %v1365 = vpack.c.b16 %v1352, %v1351
    %v1366 = vpack.c.b16 %v1354, %v1353
    %v1367 = vpack.c.b16 %v1356, %v1355
    %v1368 = vpack.c.b16 %v1358, %v1357
    %v1369 = vpack.c.b16 %v1360, %v1359
    %v1370 = vpack.c.b16 %v1362, %v1361
    %1379 = vmatprep.subr.bf16.mxu0 0
    %1380 = vmatpush1.bf16.msra.mxu0 %v1363
    %1381 = vmatprep.subr.bf16.mxu0 0
    %1382 = vmatpush1.bf16.msra.mxu0 %v1364
    %1383 = vmatprep.subr.bf16.mxu0 0
    %1384 = vmatpush1.bf16.msra.mxu0 %v1365
    %1385 = vmatprep.subr.bf16.mxu0 0
    %1386 = vmatpush1.bf16.msra.mxu0 %v1366
    %1387 = vmatprep.subr.bf16.mxu0 0
    %1388 = vmatpush1.bf16.msra.mxu0 %v1367
    %1389 = vmatprep.subr.bf16.mxu0 0
    %1390 = vmatpush1.bf16.msra.mxu0 %v1368
    %1391 = vmatprep.subr.bf16.mxu0 0
    %1392 = vmatpush1.bf16.msra.mxu0 %v1369
    %1393 = vmatprep.subr.bf16.mxu0 0
    %1394 = vmatpush1.bf16.msra.mxu0 %v1370
    %1395 = vmatprep.subr.bf16.mxu0 0
    %1396 = vmatpush1.bf16.msra.mxu0 0
    %1397 = vmatprep.subr.bf16.mxu0 0
    %1398 = vmatpush1.bf16.msra.mxu0 0
    %1399 = vmatprep.subr.bf16.mxu0 0
    %1400 = vmatpush1.bf16.msra.mxu0 0
    %1401 = vmatprep.subr.bf16.mxu0 0
    %1402 = vmatpush1.bf16.msra.mxu0 0
    %1403 = vmatprep.subr.bf16.mxu0 0
    %1404 = vmatpush1.bf16.msra.mxu0 0
    %1405 = vmatprep.subr.bf16.mxu0 0
    %1406 = vmatpush1.bf16.msra.mxu0 0
    %1407 = vmatprep.subr.bf16.mxu0 0
    %1408 = vmatpush1.bf16.msra.mxu0 0
    %1409 = vmatprep.subr.bf16.mxu0 0
    %1410 = vmatpush1.bf16.msra.mxu0 0
    %1411 = vmatprep.mubr.bf16.mxu0 0
    %1412 = vmatmul.mubr.bf16.gmra.mrb[0].mxu0 %v1309
    %v1413 = vpop.f32.mrb[0].mxu0
    %v1414 = vadd.f32 %v1330, %v1413
    %v1415 = vpop.f32.mrb[0].mxu0
    %v1416 = vpop.f32.mrb[0].mxu0
    %v1417 = vpop.f32.mrb[0].mxu0
    %1418 = vdwg.mxu0
    %v1419 = vmax.f32 %v1414, 0.0
    %v1420 = vpack.c.bf16 %v1419, %v1419
    %v1421 = vld [vmem:[#allocation7 + $0x1c0] sm:$0xf]
    %v1422 = vld [vmem:[#allocation7 + $0x1c4] sm:$0xf]
    %v1423 = vld [vmem:[#allocation7 + $0x1c8] sm:$0xf]
    %v1424 = vld [vmem:[#allocation7 + $0x1cc] sm:$0xf]
    %v1425 = vld [vmem:[#allocation7 + $0x1d0] sm:$0xf]
    %v1426 = vld [vmem:[#allocation7 + $0x1d4] sm:$0xf]
    %v1427 = vld [vmem:[#allocation7 + $0x1d8] sm:$0xf]
    %v1428 = vld [vmem:[#allocation7 + $0x1dc] sm:$0xf]
    %v1429 = vld [vmem:[#allocation7 + $0x1e0] sm:$0xf]
    %v1430 = vld [vmem:[#allocation7 + $0x1e4] sm:$0xf]
    %v1431 = vld [vmem:[#allocation7 + $0x1e8] sm:$0xf]
    %v1432 = vld [vmem:[#allocation7 + $0x1ec] sm:$0xf]
    %v1433 = vld [vmem:[#allocation7 + $0x1f0] sm:$0xf]
    %v1434 = vld [vmem:[#allocation7 + $0x1f4] sm:$0xf]
    %v1435 = vld [vmem:[#allocation7 + $0x1f8] sm:$0xf]
    %v1436 = vld [vmem:[#allocation7 + $0x1fc] sm:$0xf]
    %v1437 = vld [vmem:[%s4 + $0x4] sm:$0x1]
    %v1438 = vlaneseq
    %v1439 = vshrl.u32 %v1438, 7
    %v1440 = vsub.s32 0, %v1439
    %v1441 = vrot.slane %v1437, %v1440
    %v1458 = vunpack.c.l.b16 %v1421
    %v1459 = vunpack.c.l.b16 %v1422
    %v1460 = vunpack.c.l.b16 %v1423
    %v1461 = vunpack.c.l.b16 %v1424
    %v1462 = vunpack.c.l.b16 %v1425
    %v1463 = vunpack.c.l.b16 %v1426
    %v1464 = vunpack.c.l.b16 %v1427
    %v1465 = vunpack.c.l.b16 %v1428
    %v1466 = vunpack.c.l.b16 %v1429
    %v1467 = vunpack.c.l.b16 %v1430
    %v1468 = vunpack.c.l.b16 %v1431
    %v1469 = vunpack.c.l.b16 %v1432
    %v1470 = vunpack.c.l.b16 %v1433
    %v1471 = vunpack.c.l.b16 %v1434
    %v1472 = vunpack.c.l.b16 %v1435
    %v1473 = vunpack.c.l.b16 %v1436
    %v1474 = vpack.c.b16 %v1459, %v1458
    %v1475 = vpack.c.b16 %v1461, %v1460
    %v1476 = vpack.c.b16 %v1463, %v1462
    %v1477 = vpack.c.b16 %v1465, %v1464
    %v1478 = vpack.c.b16 %v1467, %v1466
    %v1479 = vpack.c.b16 %v1469, %v1468
    %v1480 = vpack.c.b16 %v1471, %v1470
    %v1481 = vpack.c.b16 %v1473, %v1472
    %1490 = vmatprep.subr.bf16.mxu0 0
    %1491 = vmatpush1.bf16.msra.mxu0 %v1474
    %1492 = vmatprep.subr.bf16.mxu0 0
    %1493 = vmatpush1.bf16.msra.mxu0 %v1475
    %1494 = vmatprep.subr.bf16.mxu0 0
    %1495 = vmatpush1.bf16.msra.mxu0 %v1476
    %1496 = vmatprep.subr.bf16.mxu0 0
    %1497 = vmatpush1.bf16.msra.mxu0 %v1477
    %1498 = vmatprep.subr.bf16.mxu0 0
    %1499 = vmatpush1.bf16.msra.mxu0 %v1478
    %1500 = vmatprep.subr.bf16.mxu0 0
    %1501 = vmatpush1.bf16.msra.mxu0 %v1479
    %1502 = vmatprep.subr.bf16.mxu0 0
    %1503 = vmatpush1.bf16.msra.mxu0 %v1480
    %1504 = vmatprep.subr.bf16.mxu0 0
    %1505 = vmatpush1.bf16.msra.mxu0 %v1481
    %1506 = vmatprep.subr.bf16.mxu0 0
    %1507 = vmatpush1.bf16.msra.mxu0 0
    %1508 = vmatprep.subr.bf16.mxu0 0
    %1509 = vmatpush1.bf16.msra.mxu0 0
    %1510 = vmatprep.subr.bf16.mxu0 0
    %1511 = vmatpush1.bf16.msra.mxu0 0
    %1512 = vmatprep.subr.bf16.mxu0 0
    %1513 = vmatpush1.bf16.msra.mxu0 0
    %1514 = vmatprep.subr.bf16.mxu0 0
    %1515 = vmatpush1.bf16.msra.mxu0 0
    %1516 = vmatprep.subr.bf16.mxu0 0
    %1517 = vmatpush1.bf16.msra.mxu0 0
    %1518 = vmatprep.subr.bf16.mxu0 0
    %1519 = vmatpush1.bf16.msra.mxu0 0
    %1520 = vmatprep.subr.bf16.mxu0 0
    %1521 = vmatpush1.bf16.msra.mxu0 0
    %1522 = vmatprep.mubr.bf16.mxu0 0
    %1523 = vmatmul.mubr.bf16.gmra.mrb[0].mxu0 %v1420
    %v1524 = vpop.f32.mrb[0].mxu0
    %v1525 = vadd.f32 %v1441, %v1524
    %v1526 = vpop.f32.mrb[0].mxu0
    %v1527 = vpop.f32.mrb[0].mxu0
    %v1528 = vpop.f32.mrb[0].mxu0
    %1529 = vdwg.mxu0
    %v1530 = vmax.f32 %v1525, 0.0
    %1531 = vst [vmem:[#allocation8] sm:$0xff] %v1530
    // Predicated region
    $region34: #{tpu_custom_call.1} parent=1 // pred_check
      _
    $region35: #{tpu_custom_call.1} parent=1 // pred_check_branch
      %1533 = sbr.rel (0) target = $region37
    $region36: #{tpu_custom_call.1} parent=1 // pred_region
      %s1535 = ssub.s32 128, 128
      %1536 = vsyncadd [#allocation4], %s1535
      %s1538 = sshll.u32 [#allocation8], 4
      %s1539 = int_to_ptr.vmem [resolvable:$true] %s1538
      %1541 = dma.vmem_to_hbm [thread:$0]  %s1539, 128, %s5, [#allocation4]
    $region37: #{tpu_custom_call.1} parent=1 // pred_fallthru
      _
    // Predicated region
    $region38: #{tpu_custom_call.1} parent=1 // pred_check
      _
    $region39: #{tpu_custom_call.1} parent=1 // pred_check_branch
      %1543 = sbr.rel (0) target = $region41
    $region40: #{tpu_custom_call.1} parent=1 // pred_region
      %1544 = dma.done [#allocation4], 128
    $region41: #{tpu_custom_call.1} parent=1 // pred_fallthru
      _
    %1545 = vsyncpa [#allocation3], 1
    %1546 = vsyncpa [#allocation6], 1
    %1547 = vsyncpa [#allocation4], 1

</llo_original>
